<compile_context>
chip_gen: v6e
topology: v6e:2x2x1
jax: 0.10.0
libtpu: 0.0.40
codegen_flags: <defaults>
</compile_context>

<pallas_src>
import jax
import jax.numpy as jnp
from jax import lax
from jax.experimental import pallas as pl
from jax.experimental.pallas import tpu as pltpu

VOCAB = 64       # input_size (embedding vocab), small synthetic size
HIDDEN = 32      # hidden_size
OUTPUT = 64      # output_size (self.linear is unused in forward)
SEQ = 8          # rollout length used in the demo
BATCH = 16       # independent sequences rolled out together
NUM_BLOCKS = 2   # batch chunks -> grid axis ("parallel"); megacore split on v7x


def gru_rollout_kernel(idx_ref, emb_ref, h0_ref, wr_ref, br_ref, w_ref, b_ref,
                       out_ref):
    """One batch-chunk rollout: T GRU-cell steps over Bc independent sequences.

    idx_ref : (T*Bc, 1) int32, time-major rows (row = t*Bc + b)
    emb_ref : (V, H); wr_ref/w_ref: (2H, H); br_ref/b_ref: (1, H)
    h0_ref  : (Bc, H); out_ref: (T*Bc, H)
    """
    TB, H = out_ref.shape
    Bc = h0_ref.shape[0]
    T = TB // Bc
    V = emb_ref.shape[0]

    # --- one-hot encoding of the whole chunk's characters, built on the VPU ---
    iota = lax.broadcasted_iota(jnp.int32, (TB, V), 1)
    onehot = (iota == idx_ref[...]).astype(jnp.float32)          # (T*Bc, V)

    # --- fused gather + input-projection tables (V, H): emb @ Wr_x, emb @ W_x ---
    fused_r = jnp.dot(emb_ref[...], wr_ref[:H, :],
                      preferred_element_type=jnp.float32)
    fused_w = jnp.dot(emb_ref[...], w_ref[H:, :],
                      preferred_element_type=jnp.float32)

    # --- hoisted input projections for every (t, b) in one MXU matmul each ---
    xp_r = jnp.dot(onehot, fused_r, preferred_element_type=jnp.float32) + br_ref[...]
    xp_w = jnp.dot(onehot, fused_w, preferred_element_type=jnp.float32) + b_ref[...]

    wr_h = wr_ref[H:, :]      # (H, H) multiplies h_prev
    w_rh = w_ref[:H, :]       # (H, H) multiplies rh

    # --- serial recurrence: only h-dependent dots remain per step ---
    h = h0_ref[...]           # (Bc, H)
    outs = []
    for t in range(T):        # T is small & static -> unrolled, LLO-visible
        xr = xp_r[t * Bc:(t + 1) * Bc, :]     # static, sublane-aligned slices
        xw = xp_w[t * Bc:(t + 1) * Bc, :]
        rt = jax.nn.sigmoid(
            xr + jnp.dot(h, wr_h, preferred_element_type=jnp.float32))
        rh = rt * h
        h = jnp.tanh(
            xw + jnp.dot(rh, w_rh, preferred_element_type=jnp.float32))
        outs.append(h)

    # single slab store after the loop (keeps stores off the serial chain)
    out_ref[...] = jnp.concatenate(outs, axis=0)


def gru_rollout(indices, h0, embedding, wr, br, w, b, *, num_blocks=1):
    """indices: (B, T) int32; h0: (B, H) f32. Returns all hidden states (T, B, H)."""
    B, T = indices.shape
    H = h0.shape[-1]
    V = embedding.shape[0]
    assert B % num_blocks == 0, "batch must divide evenly into blocks"
    Bc = B // num_blocks
    TB = T * Bc

    # Time-major row layout inside each chunk: row = t*Bc + b.
    idx = indices.astype(jnp.int32).reshape(num_blocks, Bc, T)
    idx = jnp.transpose(idx, (0, 2, 1)).reshape(num_blocks, TB, 1)
    h0b = h0.reshape(num_blocks, Bc, H)

    out = pl.pallas_call(
        gru_rollout_kernel,
        out_shape=jax.ShapeDtypeStruct((num_blocks, TB, H), jnp.float32),
        grid=(num_blocks,),
        in_specs=[
            pl.BlockSpec((None, TB, 1), lambda i: (i, 0, 0)),   # chunk indices (VMEM)
            pl.BlockSpec((V, H), lambda i: (0, 0)),             # embedding (resident)
            pl.BlockSpec((None, Bc, H), lambda i: (i, 0, 0)),   # chunk h0
            pl.BlockSpec((2 * H, H), lambda i: (0, 0)),         # Wr (resident)
            pl.BlockSpec((1, H), lambda i: (0, 0)),             # br
            pl.BlockSpec((2 * H, H), lambda i: (0, 0)),         # W (resident)
            pl.BlockSpec((1, H), lambda i: (0, 0)),             # b
        ],
        out_specs=pl.BlockSpec((None, TB, H), lambda i: (i, 0, 0)),
        compiler_params=pltpu.CompilerParams(
            dimension_semantics=("parallel",)),                 # 2 TCs on v7x
    )(idx, embedding, h0b, wr, br, w, b)

    # (nblk, T*Bc, H) with row = t*Bc + b  ->  (T, B, H) with B = blk*Bc + b
    out = out.reshape(num_blocks, T, Bc, H)
    out = jnp.transpose(out, (1, 0, 2, 3)).reshape(T, B, H)
    return out


def init_params(key):
    H, V, O = HIDDEN, VOCAB, OUTPUT
    ks = jax.random.split(key, 8)
    bound = 1.0 / jnp.sqrt(2.0 * H)
    params = {
        # nn.Embedding default init ~ N(0, 1)
        "embedding": jax.random.normal(ks[0], (V, H), jnp.float32),
        # GRU linears (stored transposed: (in=2H, out=H)), PyTorch-style uniform init
        "Wr": jax.random.uniform(ks[1], (2 * H, H), jnp.float32, -bound, bound),
        "br": jax.random.uniform(ks[2], (1, H), jnp.float32, -bound, bound),
        # Wz / bz exist in the module but are dead in forward() -> not used by the kernel
        "Wz": jax.random.uniform(ks[3], (2 * H, H), jnp.float32, -bound, bound),
        "bz": jax.random.uniform(ks[4], (1, H), jnp.float32, -bound, bound),
        "W": jax.random.uniform(ks[5], (2 * H, H), jnp.float32, -bound, bound),
        "b": jax.random.uniform(ks[6], (1, H), jnp.float32, -bound, bound),
        # self.linear is initialized in __init__ but NOT used in forward()
        "out_linear_w": jax.random.uniform(ks[7], (H, O), jnp.float32,
                                           -1.0 / jnp.sqrt(1.0 * H),
                                           1.0 / jnp.sqrt(1.0 * H)),
    }
    return params


def rnn_rollout_batch(chars, hidden, params, *, num_blocks=1):
    """chars: (B, T) int32; hidden: (B, H). Returns (outputs (T,B,H), final (B,H))."""
    outs = gru_rollout(chars, hidden,
                       params["embedding"], params["Wr"], params["br"],
                       params["W"], params["b"], num_blocks=num_blocks)
    return outs, outs[-1]


def rnn_rollout(chars, hidden, params):
    """Single-sequence rollout: chars (T,), hidden (1,1,H) -> ((T,1,H), (1,1,H))."""
    H = HIDDEN
    outs, fin = rnn_rollout_batch(chars.reshape(1, -1), hidden.reshape(1, H),
                                  params, num_blocks=1)
    return outs.reshape(-1, 1, H), fin.reshape(1, 1, H)


def rnn_forward(input_char, hidden, params):
    """Single-character forward, identical signature/semantics to RNN.forward.

    NOTE: per-call dispatch dwarfs T=1 compute — prefer rnn_rollout / rnn_rollout_batch
    and carry hidden across multi-step calls instead of looping over this.
    """
    chars = jnp.reshape(jnp.asarray(input_char, jnp.int32), (1,))
    outs, new_hidden = rnn_rollout(chars, hidden, params)
    return outs.reshape(1, 1, HIDDEN), new_hidden


def init_hidden():
    return jnp.zeros((1, 1, HIDDEN), jnp.float32)


def ref_rollout_batch(chars, hidden, params):
    """Pure-JAX reference replicating the PyTorch forward, step by step, batched."""
    B, T = chars.shape
    H = HIDDEN
    h = hidden
    outs = []
    for t in range(T):
        xt = params["embedding"][chars[:, t]]                              # (B, H)
        rt = jax.nn.sigmoid(
            jnp.concatenate([xt, h], axis=1) @ params["Wr"] + params["br"])
        # zt is computed in the PyTorch source but never used -> omitted
        rh = rt * h
        h = jnp.tanh(
            jnp.concatenate([rh, xt], axis=1) @ params["W"] + params["b"])
        outs.append(h)
    return jnp.stack(outs, axis=0), h                                      # (T,B,H), (B,H)


if __name__ == "__main__":
    key = jax.random.PRNGKey(0)
    params = init_params(key)

    # Deterministic character sequences for a batch of independent rollouts.
    chars = jax.random.randint(jax.random.PRNGKey(1), (BATCH, SEQ), 0, VOCAB, jnp.int32)
    h0 = jnp.zeros((BATCH, HIDDEN), jnp.float32)

    # Full batched rollout in a single kernel invocation (grid splits batch chunks).
    out_seq, final_h = rnn_rollout_batch(chars, h0, params, num_blocks=NUM_BLOCKS)
    jax.block_until_ready((out_seq, final_h))
    assert out_seq.shape == (SEQ, BATCH, HIDDEN)
    assert final_h.shape == (BATCH, HIDDEN)

    # Numerical check against a pure-JAX reference of the PyTorch forward.
    ref_out, ref_h = ref_rollout_batch(chars, h0, params)
    assert jnp.allclose(out_seq, ref_out, rtol=1e-4, atol=1e-4)
    assert jnp.allclose(final_h, ref_h, rtol=1e-4, atol=1e-4)

    # Single-sequence path (module-style semantics, one kernel for the whole sequence).
    out1, hid1 = rnn_rollout(chars[0], init_hidden(), params)
    jax.block_until_ready((out1, hid1))
    assert out1.shape == (SEQ, 1, HIDDEN) and hid1.shape == (1, 1, HIDDEN)
    assert jnp.allclose(out1[:, 0, :], ref_out[:, 0, :], rtol=1e-4, atol=1e-4)

    # Single-character API (exact RNN.forward signature) also works (T=1 path).
    outc, hidc = rnn_forward(jnp.array(5, jnp.int32), init_hidden(), params)
    jax.block_until_ready((outc, hidc))
    assert outc.shape == (1, 1, HIDDEN) and hidc.shape == (1, 1, HIDDEN)

    print("KERNEL_OK")
</pallas_src>

<mosaic_0001>
module attributes {stable_mosaic.version = 11 : i64} {
  func.func @gru_rollout_kernel(%arg0: i32, %arg1: memref<1x64x1xi32, #tpu.memory_space<vmem>>, %arg2: memref<64x32xf32, #tpu.memory_space<vmem>>, %arg3: memref<1x8x32xf32, #tpu.memory_space<vmem>>, %arg4: memref<64x32xf32, #tpu.memory_space<vmem>>, %arg5: memref<1x32xf32, #tpu.memory_space<vmem>>, %arg6: memref<64x32xf32, #tpu.memory_space<vmem>>, %arg7: memref<1x32xf32, #tpu.memory_space<vmem>>, %arg8: memref<1x64x32xf32, #tpu.memory_space<vmem>>) attributes {dimension_semantics = [#tpu.dimension_semantics<parallel>], iteration_bounds = array<i64: 2>, scalar_prefetch = 0 : i64, scratch_operands = 0 : i64, tpu.core_type = #tpu.core_type<tc>, window_params = [{transform_indices = @transform_0, window_bounds = array<i64: 1, 64, 1>}, {pipeline_mode = #tpu.pipeline_mode<synchronous>, transform_indices = @transform_1, window_bounds = array<i64: 64, 32>}, {transform_indices = @transform_2, window_bounds = array<i64: 1, 8, 32>}, {pipeline_mode = #tpu.pipeline_mode<synchronous>, transform_indices = @transform_3, window_bounds = array<i64: 64, 32>}, {pipeline_mode = #tpu.pipeline_mode<synchronous>, transform_indices = @transform_4, window_bounds = array<i64: 1, 32>}, {pipeline_mode = #tpu.pipeline_mode<synchronous>, transform_indices = @transform_5, window_bounds = array<i64: 64, 32>}, {pipeline_mode = #tpu.pipeline_mode<synchronous>, transform_indices = @transform_6, window_bounds = array<i64: 1, 32>}, {transform_indices = @transform_7, window_bounds = array<i64: 1, 64, 32>}]} {
    %0 = tpu.iota {dimensions = array<i32: 1>} : vector<64x64xi32>
    %c0 = arith.constant 0 : index
    %c0_0 = arith.constant 0 : index
    %c0_1 = arith.constant 0 : index
    %1 = vector.load %arg1[%c0, %c0_0, %c0_1] : memref<1x64x1xi32, #tpu.memory_space<vmem>>, vector<1x64x1xi32>
    %2 = vector.shape_cast %1 : vector<1x64x1xi32> to vector<64x1xi32>
    %3 = vector.broadcast %2 : vector<64x1xi32> to vector<64x64xi32>
    %4 = arith.cmpi eq, %0, %3 : vector<64x64xi32>
    %5 = arith.extui %4 : vector<64x64xi1> to vector<64x64xi32>
    %6 = arith.sitofp %5 : vector<64x64xi32> to vector<64x64xf32>
    %c0_2 = arith.constant 0 : index
    %c0_3 = arith.constant 0 : index
    %7 = vector.load %arg2[%c0_2, %c0_3] : memref<64x32xf32, #tpu.memory_space<vmem>>, vector<64x32xf32>
    %c0_4 = arith.constant 0 : index
    %c0_5 = arith.constant 0 : index
    %8 = vector.load %arg4[%c0_4, %c0_5] : memref<64x32xf32, #tpu.memory_space<vmem>>, vector<32x32xf32>
    %cst = arith.constant dense<0.000000e+00> : vector<64x32xf32>
    %9 = tpu.matmul %7, %8, %cst {dimension_numbers = #tpu.dot_dimension_numbers<[1], [0], [0], [1], [0, 0, 1, 1], [], []>} : vector<64x32xf32>, vector<32x32xf32>, vector<64x32xf32> -> vector<64x32xf32>
    %c0_6 = arith.constant 0 : index
    %c0_7 = arith.constant 0 : index
    %10 = vector.load %arg2[%c0_6, %c0_7] : memref<64x32xf32, #tpu.memory_space<vmem>>, vector<64x32xf32>
    %c32 = arith.constant 32 : index
    %c0_8 = arith.constant 0 : index
    %11 = vector.load %arg6[%c32, %c0_8] : memref<64x32xf32, #tpu.memory_space<vmem>>, vector<32x32xf32>
    %cst_9 = arith.constant dense<0.000000e+00> : vector<64x32xf32>
    %12 = tpu.matmul %10, %11, %cst_9 {dimension_numbers = #tpu.dot_dimension_numbers<[1], [0], [0], [1], [0, 0, 1, 1], [], []>} : vector<64x32xf32>, vector<32x32xf32>, vector<64x32xf32> -> vector<64x32xf32>
    %cst_10 = arith.constant dense<0.000000e+00> : vector<64x32xf32>
    %13 = tpu.matmul %6, %9, %cst_10 {dimension_numbers = #tpu.dot_dimension_numbers<[1], [0], [0], [1], [0, 0, 1, 1], [], []>} : vector<64x64xf32>, vector<64x32xf32>, vector<64x32xf32> -> vector<64x32xf32>
    %c0_11 = arith.constant 0 : index
    %c0_12 = arith.constant 0 : index
    %14 = vector.load %arg5[%c0_11, %c0_12] : memref<1x32xf32, #tpu.memory_space<vmem>>, vector<1x32xf32>
    %15 = vector.broadcast %14 : vector<1x32xf32> to vector<64x32xf32>
    %16 = arith.addf %13, %15 : vector<64x32xf32>
    %cst_13 = arith.constant dense<0.000000e+00> : vector<64x32xf32>
    %17 = tpu.matmul %6, %12, %cst_13 {dimension_numbers = #tpu.dot_dimension_numbers<[1], [0], [0], [1], [0, 0, 1, 1], [], []>} : vector<64x64xf32>, vector<64x32xf32>, vector<64x32xf32> -> vector<64x32xf32>
    %c0_14 = arith.constant 0 : index
    %c0_15 = arith.constant 0 : index
    %18 = vector.load %arg7[%c0_14, %c0_15] : memref<1x32xf32, #tpu.memory_space<vmem>>, vector<1x32xf32>
    %19 = vector.broadcast %18 : vector<1x32xf32> to vector<64x32xf32>
    %20 = arith.addf %17, %19 : vector<64x32xf32>
    %c32_16 = arith.constant 32 : index
    %c0_17 = arith.constant 0 : index
    %21 = vector.load %arg4[%c32_16, %c0_17] : memref<64x32xf32, #tpu.memory_space<vmem>>, vector<32x32xf32>
    %c0_18 = arith.constant 0 : index
    %c0_19 = arith.constant 0 : index
    %22 = vector.load %arg6[%c0_18, %c0_19] : memref<64x32xf32, #tpu.memory_space<vmem>>, vector<32x32xf32>
    %c0_20 = arith.constant 0 : index
    %c0_21 = arith.constant 0 : index
    %c0_22 = arith.constant 0 : index
    %23 = vector.load %arg3[%c0_20, %c0_21, %c0_22] : memref<1x8x32xf32, #tpu.memory_space<vmem>>, vector<1x8x32xf32>
    %24 = vector.shape_cast %23 : vector<1x8x32xf32> to vector<8x32xf32>
    %25 = vector.extract_strided_slice %16 {offsets = [0, 0], sizes = [8, 32], strides = [1, 1]} : vector<64x32xf32> to vector<8x32xf32>
    %26 = vector.extract_strided_slice %20 {offsets = [0, 0], sizes = [8, 32], strides = [1, 1]} : vector<64x32xf32> to vector<8x32xf32>
    %cst_23 = arith.constant dense<0.000000e+00> : vector<8x32xf32>
    %27 = tpu.matmul %24, %21, %cst_23 {dimension_numbers = #tpu.dot_dimension_numbers<[1], [0], [0], [1], [0, 0, 1, 1], [], []>} : vector<8x32xf32>, vector<32x32xf32>, vector<8x32xf32> -> vector<8x32xf32>
    %28 = arith.addf %25, %27 : vector<8x32xf32>
    %29 = arith.negf %28 : vector<8x32xf32>
    %30 = math.exp %29 : vector<8x32xf32>
    %cst_24 = arith.constant 1.000000e+00 : f32
    %31 = vector.broadcast %cst_24 : f32 to vector<8x32xf32>
    %32 = arith.addf %31, %30 : vector<8x32xf32>
    %33 = arith.divf %31, %32 : vector<8x32xf32>
    %34 = arith.mulf %33, %24 : vector<8x32xf32>
    %cst_25 = arith.constant dense<0.000000e+00> : vector<8x32xf32>
    %35 = tpu.matmul %34, %22, %cst_25 {dimension_numbers = #tpu.dot_dimension_numbers<[1], [0], [0], [1], [0, 0, 1, 1], [], []>} : vector<8x32xf32>, vector<32x32xf32>, vector<8x32xf32> -> vector<8x32xf32>
    %36 = arith.addf %26, %35 : vector<8x32xf32>
    %37 = math.tanh %36 : vector<8x32xf32>
    %38 = vector.extract_strided_slice %16 {offsets = [8, 0], sizes = [8, 32], strides = [1, 1]} : vector<64x32xf32> to vector<8x32xf32>
    %39 = vector.extract_strided_slice %20 {offsets = [8, 0], sizes = [8, 32], strides = [1, 1]} : vector<64x32xf32> to vector<8x32xf32>
    %cst_26 = arith.constant dense<0.000000e+00> : vector<8x32xf32>
    %40 = tpu.matmul %37, %21, %cst_26 {dimension_numbers = #tpu.dot_dimension_numbers<[1], [0], [0], [1], [0, 0, 1, 1], [], []>} : vector<8x32xf32>, vector<32x32xf32>, vector<8x32xf32> -> vector<8x32xf32>
    %41 = arith.addf %38, %40 : vector<8x32xf32>
    %42 = arith.negf %41 : vector<8x32xf32>
    %43 = math.exp %42 : vector<8x32xf32>
    %cst_27 = arith.constant 1.000000e+00 : f32
    %44 = vector.broadcast %cst_27 : f32 to vector<8x32xf32>
    %45 = arith.addf %44, %43 : vector<8x32xf32>
    %46 = arith.divf %44, %45 : vector<8x32xf32>
    %47 = arith.mulf %46, %37 : vector<8x32xf32>
    %cst_28 = arith.constant dense<0.000000e+00> : vector<8x32xf32>
    %48 = tpu.matmul %47, %22, %cst_28 {dimension_numbers = #tpu.dot_dimension_numbers<[1], [0], [0], [1], [0, 0, 1, 1], [], []>} : vector<8x32xf32>, vector<32x32xf32>, vector<8x32xf32> -> vector<8x32xf32>
    %49 = arith.addf %39, %48 : vector<8x32xf32>
    %50 = math.tanh %49 : vector<8x32xf32>
    %51 = vector.extract_strided_slice %16 {offsets = [16, 0], sizes = [8, 32], strides = [1, 1]} : vector<64x32xf32> to vector<8x32xf32>
    %52 = vector.extract_strided_slice %20 {offsets = [16, 0], sizes = [8, 32], strides = [1, 1]} : vector<64x32xf32> to vector<8x32xf32>
    %cst_29 = arith.constant dense<0.000000e+00> : vector<8x32xf32>
    %53 = tpu.matmul %50, %21, %cst_29 {dimension_numbers = #tpu.dot_dimension_numbers<[1], [0], [0], [1], [0, 0, 1, 1], [], []>} : vector<8x32xf32>, vector<32x32xf32>, vector<8x32xf32> -> vector<8x32xf32>
    %54 = arith.addf %51, %53 : vector<8x32xf32>
    %55 = arith.negf %54 : vector<8x32xf32>
    %56 = math.exp %55 : vector<8x32xf32>
    %cst_30 = arith.constant 1.000000e+00 : f32
    %57 = vector.broadcast %cst_30 : f32 to vector<8x32xf32>
    %58 = arith.addf %57, %56 : vector<8x32xf32>
    %59 = arith.divf %57, %58 : vector<8x32xf32>
    %60 = arith.mulf %59, %50 : vector<8x32xf32>
    %cst_31 = arith.constant dense<0.000000e+00> : vector<8x32xf32>
    %61 = tpu.matmul %60, %22, %cst_31 {dimension_numbers = #tpu.dot_dimension_numbers<[1], [0], [0], [1], [0, 0, 1, 1], [], []>} : vector<8x32xf32>, vector<32x32xf32>, vector<8x32xf32> -> vector<8x32xf32>
    %62 = arith.addf %52, %61 : vector<8x32xf32>
    %63 = math.tanh %62 : vector<8x32xf32>
    %64 = vector.extract_strided_slice %16 {offsets = [24, 0], sizes = [8, 32], strides = [1, 1]} : vector<64x32xf32> to vector<8x32xf32>
    %65 = vector.extract_strided_slice %20 {offsets = [24, 0], sizes = [8, 32], strides = [1, 1]} : vector<64x32xf32> to vector<8x32xf32>
    %cst_32 = arith.constant dense<0.000000e+00> : vector<8x32xf32>
    %66 = tpu.matmul %63, %21, %cst_32 {dimension_numbers = #tpu.dot_dimension_numbers<[1], [0], [0], [1], [0, 0, 1, 1], [], []>} : vector<8x32xf32>, vector<32x32xf32>, vector<8x32xf32> -> vector<8x32xf32>
    %67 = arith.addf %64, %66 : vector<8x32xf32>
    %68 = arith.negf %67 : vector<8x32xf32>
    %69 = math.exp %68 : vector<8x32xf32>
    %cst_33 = arith.constant 1.000000e+00 : f32
    %70 = vector.broadcast %cst_33 : f32 to vector<8x32xf32>
    %71 = arith.addf %70, %69 : vector<8x32xf32>
    %72 = arith.divf %70, %71 : vector<8x32xf32>
    %73 = arith.mulf %72, %63 : vector<8x32xf32>
    %cst_34 = arith.constant dense<0.000000e+00> : vector<8x32xf32>
    %74 = tpu.matmul %73, %22, %cst_34 {dimension_numbers = #tpu.dot_dimension_numbers<[1], [0], [0], [1], [0, 0, 1, 1], [], []>} : vector<8x32xf32>, vector<32x32xf32>, vector<8x32xf32> -> vector<8x32xf32>
    %75 = arith.addf %65, %74 : vector<8x32xf32>
    %76 = math.tanh %75 : vector<8x32xf32>
    %77 = vector.extract_strided_slice %16 {offsets = [32, 0], sizes = [8, 32], strides = [1, 1]} : vector<64x32xf32> to vector<8x32xf32>
    %78 = vector.extract_strided_slice %20 {offsets = [32, 0], sizes = [8, 32], strides = [1, 1]} : vector<64x32xf32> to vector<8x32xf32>
    %cst_35 = arith.constant dense<0.000000e+00> : vector<8x32xf32>
    %79 = tpu.matmul %76, %21, %cst_35 {dimension_numbers = #tpu.dot_dimension_numbers<[1], [0], [0], [1], [0, 0, 1, 1], [], []>} : vector<8x32xf32>, vector<32x32xf32>, vector<8x32xf32> -> vector<8x32xf32>
    %80 = arith.addf %77, %79 : vector<8x32xf32>
    %81 = arith.negf %80 : vector<8x32xf32>
    %82 = math.exp %81 : vector<8x32xf32>
    %cst_36 = arith.constant 1.000000e+00 : f32
    %83 = vector.broadcast %cst_36 : f32 to vector<8x32xf32>
    %84 = arith.addf %83, %82 : vector<8x32xf32>
    %85 = arith.divf %83, %84 : vector<8x32xf32>
    %86 = arith.mulf %85, %76 : vector<8x32xf32>
    %cst_37 = arith.constant dense<0.000000e+00> : vector<8x32xf32>
    %87 = tpu.matmul %86, %22, %cst_37 {dimension_numbers = #tpu.dot_dimension_numbers<[1], [0], [0], [1], [0, 0, 1, 1], [], []>} : vector<8x32xf32>, vector<32x32xf32>, vector<8x32xf32> -> vector<8x32xf32>
    %88 = arith.addf %78, %87 : vector<8x32xf32>
    %89 = math.tanh %88 : vector<8x32xf32>
    %90 = vector.extract_strided_slice %16 {offsets = [40, 0], sizes = [8, 32], strides = [1, 1]} : vector<64x32xf32> to vector<8x32xf32>
    %91 = vector.extract_strided_slice %20 {offsets = [40, 0], sizes = [8, 32], strides = [1, 1]} : vector<64x32xf32> to vector<8x32xf32>
    %cst_38 = arith.constant dense<0.000000e+00> : vector<8x32xf32>
    %92 = tpu.matmul %89, %21, %cst_38 {dimension_numbers = #tpu.dot_dimension_numbers<[1], [0], [0], [1], [0, 0, 1, 1], [], []>} : vector<8x32xf32>, vector<32x32xf32>, vector<8x32xf32> -> vector<8x32xf32>
    %93 = arith.addf %90, %92 : vector<8x32xf32>
    %94 = arith.negf %93 : vector<8x32xf32>
    %95 = math.exp %94 : vector<8x32xf32>
    %cst_39 = arith.constant 1.000000e+00 : f32
    %96 = vector.broadcast %cst_39 : f32 to vector<8x32xf32>
    %97 = arith.addf %96, %95 : vector<8x32xf32>
    %98 = arith.divf %96, %97 : vector<8x32xf32>
    %99 = arith.mulf %98, %89 : vector<8x32xf32>
    %cst_40 = arith.constant dense<0.000000e+00> : vector<8x32xf32>
    %100 = tpu.matmul %99, %22, %cst_40 {dimension_numbers = #tpu.dot_dimension_numbers<[1], [0], [0], [1], [0, 0, 1, 1], [], []>} : vector<8x32xf32>, vector<32x32xf32>, vector<8x32xf32> -> vector<8x32xf32>
    %101 = arith.addf %91, %100 : vector<8x32xf32>
    %102 = math.tanh %101 : vector<8x32xf32>
    %103 = vector.extract_strided_slice %16 {offsets = [48, 0], sizes = [8, 32], strides = [1, 1]} : vector<64x32xf32> to vector<8x32xf32>
    %104 = vector.extract_strided_slice %20 {offsets = [48, 0], sizes = [8, 32], strides = [1, 1]} : vector<64x32xf32> to vector<8x32xf32>
    %cst_41 = arith.constant dense<0.000000e+00> : vector<8x32xf32>
    %105 = tpu.matmul %102, %21, %cst_41 {dimension_numbers = #tpu.dot_dimension_numbers<[1], [0], [0], [1], [0, 0, 1, 1], [], []>} : vector<8x32xf32>, vector<32x32xf32>, vector<8x32xf32> -> vector<8x32xf32>
    %106 = arith.addf %103, %105 : vector<8x32xf32>
    %107 = arith.negf %106 : vector<8x32xf32>
    %108 = math.exp %107 : vector<8x32xf32>
    %cst_42 = arith.constant 1.000000e+00 : f32
    %109 = vector.broadcast %cst_42 : f32 to vector<8x32xf32>
    %110 = arith.addf %109, %108 : vector<8x32xf32>
    %111 = arith.divf %109, %110 : vector<8x32xf32>
    %112 = arith.mulf %111, %102 : vector<8x32xf32>
    %cst_43 = arith.constant dense<0.000000e+00> : vector<8x32xf32>
    %113 = tpu.matmul %112, %22, %cst_43 {dimension_numbers = #tpu.dot_dimension_numbers<[1], [0], [0], [1], [0, 0, 1, 1], [], []>} : vector<8x32xf32>, vector<32x32xf32>, vector<8x32xf32> -> vector<8x32xf32>
    %114 = arith.addf %104, %113 : vector<8x32xf32>
    %115 = math.tanh %114 : vector<8x32xf32>
    %116 = vector.extract_strided_slice %16 {offsets = [56, 0], sizes = [8, 32], strides = [1, 1]} : vector<64x32xf32> to vector<8x32xf32>
    %117 = vector.extract_strided_slice %20 {offsets = [56, 0], sizes = [8, 32], strides = [1, 1]} : vector<64x32xf32> to vector<8x32xf32>
    %cst_44 = arith.constant dense<0.000000e+00> : vector<8x32xf32>
    %118 = tpu.matmul %115, %21, %cst_44 {dimension_numbers = #tpu.dot_dimension_numbers<[1], [0], [0], [1], [0, 0, 1, 1], [], []>} : vector<8x32xf32>, vector<32x32xf32>, vector<8x32xf32> -> vector<8x32xf32>
    %119 = arith.addf %116, %118 : vector<8x32xf32>
    %120 = arith.negf %119 : vector<8x32xf32>
    %121 = math.exp %120 : vector<8x32xf32>
    %cst_45 = arith.constant 1.000000e+00 : f32
    %122 = vector.broadcast %cst_45 : f32 to vector<8x32xf32>
    %123 = arith.addf %122, %121 : vector<8x32xf32>
    %124 = arith.divf %122, %123 : vector<8x32xf32>
    %125 = arith.mulf %124, %115 : vector<8x32xf32>
    %cst_46 = arith.constant dense<0.000000e+00> : vector<8x32xf32>
    %126 = tpu.matmul %125, %22, %cst_46 {dimension_numbers = #tpu.dot_dimension_numbers<[1], [0], [0], [1], [0, 0, 1, 1], [], []>} : vector<8x32xf32>, vector<32x32xf32>, vector<8x32xf32> -> vector<8x32xf32>
    %127 = arith.addf %117, %126 : vector<8x32xf32>
    %128 = math.tanh %127 : vector<8x32xf32>
    %129 = tpu.concatenate %37, %50, %63, %76, %89, %102, %115, %128 in 0 : vector<8x32xf32>, vector<8x32xf32>, vector<8x32xf32>, vector<8x32xf32>, vector<8x32xf32>, vector<8x32xf32>, vector<8x32xf32>, vector<8x32xf32> -> vector<64x32xf32>
    %c0_47 = arith.constant 0 : index
    %c0_48 = arith.constant 0 : index
    %c0_49 = arith.constant 0 : index
    %130 = vector.load %arg8[%c0_47, %c0_48, %c0_49] : memref<1x64x32xf32, #tpu.memory_space<vmem>>, vector<1x64x32xf32>
    %131 = vector.shape_cast %130 : vector<1x64x32xf32> to vector<64x32xf32>
    %132 = vector.shape_cast %129 : vector<64x32xf32> to vector<1x64x32xf32>
    tpu.vector_store %arg8[%c0_47, %c0_48, %c0_49], %132 {strides = array<i32>} : memref<1x64x32xf32, #tpu.memory_space<vmem>>, vector<1x64x32xf32>,
    return
  }
  func.func @transform_0(%arg0: i32) -> (i32, i32, i32) {
    %c0_i32 = arith.constant 0 : i32
    %c0_i32_0 = arith.constant 0 : i32
    %c0_i32_1 = arith.constant 0 : i32
    return %arg0, %c0_i32, %c0_i32_0 : i32, i32, i32
  }
  func.func @transform_1(%arg0: i32) -> (i32, i32) {
    %c0_i32 = arith.constant 0 : i32
    %c0_i32_0 = arith.constant 0 : i32
    %c0_i32_1 = arith.constant 0 : i32
    return %c0_i32, %c0_i32_0 : i32, i32
  }
  func.func @transform_2(%arg0: i32) -> (i32, i32, i32) {
    %c0_i32 = arith.constant 0 : i32
    %c0_i32_0 = arith.constant 0 : i32
    %c0_i32_1 = arith.constant 0 : i32
    return %arg0, %c0_i32, %c0_i32_0 : i32, i32, i32
  }
  func.func @transform_3(%arg0: i32) -> (i32, i32) {
    %c0_i32 = arith.constant 0 : i32
    %c0_i32_0 = arith.constant 0 : i32
    %c0_i32_1 = arith.constant 0 : i32
    return %c0_i32, %c0_i32_0 : i32, i32
  }
  func.func @transform_4(%arg0: i32) -> (i32, i32) {
    %c0_i32 = arith.constant 0 : i32
    %c0_i32_0 = arith.constant 0 : i32
    %c0_i32_1 = arith.constant 0 : i32
    return %c0_i32, %c0_i32_0 : i32, i32
  }
  func.func @transform_5(%arg0: i32) -> (i32, i32) {
    %c0_i32 = arith.constant 0 : i32
    %c0_i32_0 = arith.constant 0 : i32
    %c0_i32_1 = arith.constant 0 : i32
    return %c0_i32, %c0_i32_0 : i32, i32
  }
  func.func @transform_6(%arg0: i32) -> (i32, i32) {
    %c0_i32 = arith.constant 0 : i32
    %c0_i32_0 = arith.constant 0 : i32
    %c0_i32_1 = arith.constant 0 : i32
    return %c0_i32, %c0_i32_0 : i32, i32
  }
  func.func @transform_7(%arg0: i32) -> (i32, i32, i32) {
    %c0_i32 = arith.constant 0 : i32
    %c0_i32_0 = arith.constant 0 : i32
    %c0_i32_1 = arith.constant 0 : i32
    return %arg0, %c0_i32, %c0_i32_0 : i32, i32, i32
  }
}

</mosaic_0001>

<llo_original>
// kernel: tpu_custom_call.1
$region0: #{tpu_custom_call.1}
  #allocation0 [shape = 'u32[]', space=smem, size = 0x4, offset = 0x4, fixed_abs, tag = 'smem constant byte address 0x4 - core index']
  #allocation1 [shape = 'u32[144,128]{1,0:T(1,128)}', space=vmem, size = 0x12000, scoped, tag = 'internal scratch']
  %s0 = inlined_call_operand.vmem [shape: s32[2,64,1], index: 0, kind: input, shape index: {}]
  %s1 = inlined_call_operand.vmem [shape: f32[64,32], index: 1, kind: input, shape index: {}]
  %s2 = inlined_call_operand.vmem [shape: f32[2,8,32], index: 2, kind: input, shape index: {}]
  %s3 = inlined_call_operand.vmem [shape: f32[64,32], index: 3, kind: input, shape index: {}]
  %s4 = inlined_call_operand.vmem [shape: f32[1,32], index: 4, kind: input, shape index: {}]
  %s5 = inlined_call_operand.vmem [shape: f32[64,32], index: 5, kind: input, shape index: {}]
  %s6 = inlined_call_operand.vmem [shape: f32[1,32], index: 6, kind: input, shape index: {}]
  %s7 = inlined_call_operand.vmem [shape: f32[2,64,32], index: 7, kind: output, shape index: {}]
  %s8 = sld [smem:[#allocation0]]
  $region61: #{tpu_custom_call.1} parent=0
    _
  %s10 = ssub.s32 1, %s8
  %s11 = scalar_select 0, %s10, %s8
  loop: start=0, step=1, limit=4
  $region2: #{tpu_custom_call.1} parent=0 // loop_pre_header
    _
  $region3: #{tpu_custom_call.1} parent=0 // loop_header
    %s13 = sphi 0, %s17
    %p14 = scmp.ge.s32.totalorder %s13, 4
    %s23 = sphi 0, %s25
    %s26 = sphi 0, %s23
    %s27 = sphi 0, %s26
    %s43 = sphi 0, %s27
    %s47 = sphi 0, %s47
    %s49 = sphi 0, %s47
    %s50 = sphi 0, %s49
    %s64 = sphi 0, %s50
    %s70 = sphi 0, %s72
    %s73 = sphi 0, %s70
    %s74 = sphi 0, %s73
    %s90 = sphi 0, %s74
    %s94 = sphi 0, %s94
    %s96 = sphi 0, %s94
    %s97 = sphi 0, %s96
    %s111 = sphi 0, %s97
    %s115 = sphi 0, %s115
    %s117 = sphi 0, %s115
    %s118 = sphi 0, %s117
    %s132 = sphi 0, %s118
    %s136 = sphi 0, %s136
    %s138 = sphi 0, %s136
    %s139 = sphi 0, %s138
    %s153 = sphi 0, %s139
    %s157 = sphi 0, %s157
    %s159 = sphi 0, %s157
    %s160 = sphi 0, %s159
    %s174 = sphi 0, %s160
    %s180 = sphi 0, %s182
    %s183 = sphi 0, %s180
    %s184 = sphi 0, %s183
    %s200 = sphi 0, %s184
  $region4: #{tpu_custom_call.1} parent=0 // loop_header_branch
    %16 = sbr.rel (%p14) target = $region8
  $region5: #{tpu_custom_call.1} parent=0 // loop_body
    %s18 = ssub.s32 %s13, 1
    %s19 = ssub.s32 %s13, 2
    %s20 = sadd.s32 %s13, 1
    %s21 = ssub.s32 %s13, %s20
    %p22 = scmp.eq.s32.totalorder %s21, 0
    %s24 = sadd.s32 %s23, 1
    %s25 = scalar_select %p22, %s23, %s24
    %p28 = pneg %p22
    %p29 = scmp.eq.s32.totalorder %s13, 1
    %p30 = por %p28, %p29
    %p31 = scmp.ne.s32.totalorder %s23, %s26
    %p32 = scmp.eq.s32.totalorder %s13, 0
    %p33 = por %p31, %p32
    %p34 = scmp.ne.s32.totalorder %s23, %s26
    %p35 = scmp.eq.s32.totalorder %s18, 1
    %p36 = por %p34, %p35
    %p37 = scmp.ne.s32.totalorder %s26, %s27
    %p38 = scmp.eq.s32.totalorder %s18, 0
    %p39 = por %p37, %p38
    %p40 = scmp.ne.s32.totalorder %s26, %s27
    %p41 = scmp.eq.s32.totalorder %s19, 1
    %p42 = por %p40, %p41
    %p44 = scmp.ne.s32.totalorder %s27, %s43
    %p45 = scmp.eq.s32.totalorder %s19, 0
    %p46 = por %p44, %p45
    %s48 = sadd.s32 %s47, 1
    %p51 = scmp.eq.s32.totalorder %s13, 1
    %p52 = scmp.ne.s32.totalorder %s47, %s49
    %p53 = scmp.eq.s32.totalorder %s13, 0
    %p54 = por %p52, %p53
    %p55 = scmp.ne.s32.totalorder %s47, %s49
    %p56 = scmp.eq.s32.totalorder %s18, 1
    %p57 = por %p55, %p56
    %p58 = scmp.ne.s32.totalorder %s49, %s50
    %p59 = scmp.eq.s32.totalorder %s18, 0
    %p60 = por %p58, %p59
    %p61 = scmp.ne.s32.totalorder %s49, %s50
    %p62 = scmp.eq.s32.totalorder %s19, 1
    %p63 = por %p61, %p62
    %p65 = scmp.ne.s32.totalorder %s50, %s64
    %p66 = scmp.eq.s32.totalorder %s19, 0
    %p67 = por %p65, %p66
    %s68 = ssub.s32 %s13, %s20
    %p69 = scmp.eq.s32.totalorder %s68, 0
    %s71 = sadd.s32 %s70, 1
    %s72 = scalar_select %p69, %s70, %s71
    %p75 = pneg %p69
    %p76 = scmp.eq.s32.totalorder %s13, 1
    %p77 = por %p75, %p76
    %p78 = scmp.ne.s32.totalorder %s70, %s73
    %p79 = scmp.eq.s32.totalorder %s13, 0
    %p80 = por %p78, %p79
    %p81 = scmp.ne.s32.totalorder %s70, %s73
    %p82 = scmp.eq.s32.totalorder %s18, 1
    %p83 = por %p81, %p82
    %p84 = scmp.ne.s32.totalorder %s73, %s74
    %p85 = scmp.eq.s32.totalorder %s18, 0
    %p86 = por %p84, %p85
    %p87 = scmp.ne.s32.totalorder %s73, %s74
    %p88 = scmp.eq.s32.totalorder %s19, 1
    %p89 = por %p87, %p88
    %p91 = scmp.ne.s32.totalorder %s74, %s90
    %p92 = scmp.eq.s32.totalorder %s19, 0
    %p93 = por %p91, %p92
    %s95 = sadd.s32 %s94, 1
    %p98 = scmp.eq.s32.totalorder %s13, 1
    %p99 = scmp.ne.s32.totalorder %s94, %s96
    %p100 = scmp.eq.s32.totalorder %s13, 0
    %p101 = por %p99, %p100
    %p102 = scmp.ne.s32.totalorder %s94, %s96
    %p103 = scmp.eq.s32.totalorder %s18, 1
    %p104 = por %p102, %p103
    %p105 = scmp.ne.s32.totalorder %s96, %s97
    %p106 = scmp.eq.s32.totalorder %s18, 0
    %p107 = por %p105, %p106
    %p108 = scmp.ne.s32.totalorder %s96, %s97
    %p109 = scmp.eq.s32.totalorder %s19, 1
    %p110 = por %p108, %p109
    %p112 = scmp.ne.s32.totalorder %s97, %s111
    %p113 = scmp.eq.s32.totalorder %s19, 0
    %p114 = por %p112, %p113
    %s116 = sadd.s32 %s115, 1
    %p119 = scmp.eq.s32.totalorder %s13, 1
    %p120 = scmp.ne.s32.totalorder %s115, %s117
    %p121 = scmp.eq.s32.totalorder %s13, 0
    %p122 = por %p120, %p121
    %p123 = scmp.ne.s32.totalorder %s115, %s117
    %p124 = scmp.eq.s32.totalorder %s18, 1
    %p125 = por %p123, %p124
    %p126 = scmp.ne.s32.totalorder %s117, %s118
    %p127 = scmp.eq.s32.totalorder %s18, 0
    %p128 = por %p126, %p127
    %p129 = scmp.ne.s32.totalorder %s117, %s118
    %p130 = scmp.eq.s32.totalorder %s19, 1
    %p131 = por %p129, %p130
    %p133 = scmp.ne.s32.totalorder %s118, %s132
    %p134 = scmp.eq.s32.totalorder %s19, 0
    %p135 = por %p133, %p134
    %s137 = sadd.s32 %s136, 1
    %p140 = scmp.eq.s32.totalorder %s13, 1
    %p141 = scmp.ne.s32.totalorder %s136, %s138
    %p142 = scmp.eq.s32.totalorder %s13, 0
    %p143 = por %p141, %p142
    %p144 = scmp.ne.s32.totalorder %s136, %s138
    %p145 = scmp.eq.s32.totalorder %s18, 1
    %p146 = por %p144, %p145
    %p147 = scmp.ne.s32.totalorder %s138, %s139
    %p148 = scmp.eq.s32.totalorder %s18, 0
    %p149 = por %p147, %p148
    %p150 = scmp.ne.s32.totalorder %s138, %s139
    %p151 = scmp.eq.s32.totalorder %s19, 1
    %p152 = por %p150, %p151
    %p154 = scmp.ne.s32.totalorder %s139, %s153
    %p155 = scmp.eq.s32.totalorder %s19, 0
    %p156 = por %p154, %p155
    %s158 = sadd.s32 %s157, 1
    %p161 = scmp.eq.s32.totalorder %s13, 1
    %p162 = scmp.ne.s32.totalorder %s157, %s159
    %p163 = scmp.eq.s32.totalorder %s13, 0
    %p164 = por %p162, %p163
    %p165 = scmp.ne.s32.totalorder %s157, %s159
    %p166 = scmp.eq.s32.totalorder %s18, 1
    %p167 = por %p165, %p166
    %p168 = scmp.ne.s32.totalorder %s159, %s160
    %p169 = scmp.eq.s32.totalorder %s18, 0
    %p170 = por %p168, %p169
    %p171 = scmp.ne.s32.totalorder %s159, %s160
    %p172 = scmp.eq.s32.totalorder %s19, 1
    %p173 = por %p171, %p172
    %p175 = scmp.ne.s32.totalorder %s160, %s174
    %p176 = scmp.eq.s32.totalorder %s19, 0
    %p177 = por %p175, %p176
    %s178 = ssub.s32 %s13, %s20
    %p179 = scmp.eq.s32.totalorder %s178, 0
    %s181 = sadd.s32 %s180, 1
    %s182 = scalar_select %p179, %s180, %s181
    %p185 = pneg %p179
    %p186 = scmp.eq.s32.totalorder %s13, 1
    %p187 = por %p185, %p186
    %p188 = scmp.ne.s32.totalorder %s180, %s183
    %p189 = scmp.eq.s32.totalorder %s13, 0
    %p190 = por %p188, %p189
    %p191 = scmp.ne.s32.totalorder %s180, %s183
    %p192 = scmp.eq.s32.totalorder %s18, 1
    %p193 = por %p191, %p192
    %p194 = scmp.ne.s32.totalorder %s183, %s184
    %p195 = scmp.eq.s32.totalorder %s18, 0
    %p196 = por %p194, %p195
    %p197 = scmp.ne.s32.totalorder %s183, %s184
    %p198 = scmp.eq.s32.totalorder %s19, 1
    %p199 = por %p197, %p198
    %p201 = scmp.ne.s32.totalorder %s184, %s200
    %p202 = scmp.eq.s32.totalorder %s19, 0
    %p203 = por %p201, %p202
    %p204 = scmp.le.s32.totalorder 1, %s13
    %p205 = scmp.lt.s32.totalorder %s13, 3
    %p206 = pnand %p204, %p205
    %p207 = pneg %p206
    // Predicated region
    $region9: #{tpu_custom_call.1} parent=5 // pred_check
      _
    $region10: #{tpu_custom_call.1} parent=5 // pred_check_branch
      %209 = sbr.rel (%p206) target = $region12
    $region11: #{tpu_custom_call.1} parent=5 // pred_region
      %s210 = ssub.s32 %s13, 1
      // Predicated region
      $region13: #{tpu_custom_call.1} parent=11 // pred_check
        %p211 = pneg %p60
      $region14: #{tpu_custom_call.1} parent=11 // pred_check_branch
        %213 = sbr.rel (%p211) target = $region16
      $region15: #{tpu_custom_call.1} parent=11 // pred_region
        _
      $region16: #{tpu_custom_call.1} parent=11 // pred_fallthru
        _
      // Predicated region
      $region17: #{tpu_custom_call.1} parent=11 // pred_check
        %p214 = pneg %p107
      $region18: #{tpu_custom_call.1} parent=11 // pred_check_branch
        %216 = sbr.rel (%p214) target = $region20
      $region19: #{tpu_custom_call.1} parent=11 // pred_region
        _
      $region20: #{tpu_custom_call.1} parent=11 // pred_fallthru
        _
      // Predicated region
      $region21: #{tpu_custom_call.1} parent=11 // pred_check
        %p217 = pneg %p128
      $region22: #{tpu_custom_call.1} parent=11 // pred_check_branch
        %219 = sbr.rel (%p217) target = $region24
      $region23: #{tpu_custom_call.1} parent=11 // pred_region
        _
      $region24: #{tpu_custom_call.1} parent=11 // pred_fallthru
        _
      // Predicated region
      $region25: #{tpu_custom_call.1} parent=11 // pred_check
        %p220 = pneg %p149
      $region26: #{tpu_custom_call.1} parent=11 // pred_check_branch
        %222 = sbr.rel (%p220) target = $region28
      $region27: #{tpu_custom_call.1} parent=11 // pred_region
        _
      $region28: #{tpu_custom_call.1} parent=11 // pred_fallthru
        _
      // Predicated region
      $region29: #{tpu_custom_call.1} parent=11 // pred_check
        %p223 = pneg %p170
      $region30: #{tpu_custom_call.1} parent=11 // pred_check_branch
        %225 = sbr.rel (%p223) target = $region32
      $region31: #{tpu_custom_call.1} parent=11 // pred_region
        _
      $region32: #{tpu_custom_call.1} parent=11 // pred_fallthru
        _
    $region12: #{tpu_custom_call.1} parent=5 // pred_fallthru
      _
    %p226 = scmp.lt.s32.totalorder %s13, 2
    // Predicated region
    $region33: #{tpu_custom_call.1} parent=5 // pred_check
      %p227 = pneg %p226
    $region34: #{tpu_custom_call.1} parent=5 // pred_check_branch
      %229 = sbr.rel (%p227) target = $region36
    $region35: #{tpu_custom_call.1} parent=5 // pred_region
      // Predicated region
      $region37: #{tpu_custom_call.1} parent=35 // pred_check
        %p230 = pneg %p33
      $region38: #{tpu_custom_call.1} parent=35 // pred_check_branch
        %232 = sbr.rel (%p230) target = $region40
      $region39: #{tpu_custom_call.1} parent=35 // pred_region
        %p233 = scmp.lt.s32.totalorder %s13, 1
        %s234 = scalar_select %p233, %s13, 1
        %s235 = smul.addr %s234, 8
        %s236 = smul.addr %s235, 8
        %s237 = scalar_lea.vmem %s0, %s236
      $region40: #{tpu_custom_call.1} parent=35 // pred_fallthru
        _
      // Predicated region
      $region41: #{tpu_custom_call.1} parent=35 // pred_check
        %p238 = pneg %p80
      $region42: #{tpu_custom_call.1} parent=35 // pred_check_branch
        %240 = sbr.rel (%p238) target = $region44
      $region43: #{tpu_custom_call.1} parent=35 // pred_region
        %p241 = scmp.lt.s32.totalorder %s13, 1
        %s242 = scalar_select %p241, %s13, 1
        %s243 = smul.addr %s242, 8
        %s244 = scalar_lea.vmem %s2, %s243
      $region44: #{tpu_custom_call.1} parent=35 // pred_fallthru
        _
    $region36: #{tpu_custom_call.1} parent=5 // pred_fallthru
      _
    %p245 = scmp.le.s32.totalorder 1, %s13
    %p246 = scmp.lt.s32.totalorder %s13, 3
    %p247 = pnand %p245, %p246
    %p248 = pneg %p247
    // Predicated region
    $region45: #{tpu_custom_call.1} parent=5 // pred_check
      _
    $region46: #{tpu_custom_call.1} parent=5 // pred_check_branch
      %250 = sbr.rel (%p247) target = $region48
    $region47: #{tpu_custom_call.1} parent=5 // pred_region
      %s251 = ssub.s32 %s13, 1
      %p252 = scmp.lt.s32.totalorder %s18, 1
      %s253 = scalar_select %p252, %s18, 1
      %s254 = smul.addr %s253, 8
      %s255 = smul.addr %s254, 8
      %s256 = scalar_lea.vmem %s0, %s255
      %p257 = pneg %p39
      %p258 = pneg %p36
      %p259 = pneg %p60
      %p260 = pneg %p57
      %p261 = scmp.lt.s32.totalorder %s18, 1
      %s262 = scalar_select %p261, %s18, 1
      %s263 = smul.addr %s262, 8
      %s264 = scalar_lea.vmem %s2, %s263
      %p265 = pneg %p86
      %p266 = pneg %p83
      %p267 = pneg %p107
      %p268 = pneg %p104
      %p269 = pneg %p128
      %p270 = pneg %p125
      %p271 = pneg %p149
      %p272 = pneg %p146
      %p273 = pneg %p170
      %p274 = pneg %p167
      %p275 = pneg %p196
      %p276 = pneg %p193
      %p277 = scmp.lt.s32.totalorder %s18, 1
      %s278 = scalar_select %p277, %s18, 1
      %s279 = smul.addr %s278, 8
      %s280 = smul.addr %s279, 8
      %s281 = scalar_lea.vmem %s7, %s280
      %p282 = scmp.lt.s32.totalorder %s18, 1
      %s283 = scalar_select %p282, %s18, 1
      %s284 = smul.addr %s283, 8
      %s285 = smul.addr %s284, 8
      %s286 = scalar_lea.vmem %s0, %s285
      %p287 = scmp.lt.s32.totalorder %s18, 1
      %s288 = scalar_select %p287, %s18, 1
      %s289 = smul.addr %s288, 8
      %s290 = scalar_lea.vmem %s2, %s289
      %p291 = scmp.lt.s32.totalorder %s18, 1
      %s292 = scalar_select %p291, %s18, 1
      %s293 = smul.addr %s292, 8
      %s294 = smul.addr %s293, 8
      %s295 = scalar_lea.vmem %s7, %s294
      %v296 = vlaneseq
      %v297 = vand.u32 %v296, 127
      %v298 = vld [vmem:[%s286] sm:$0xff]
      %v299 = vld [vmem:[%s286 + $0x8] sm:$0xff]
      %v300 = vld [vmem:[%s286 + $0x10] sm:$0xff]
      %v301 = vld [vmem:[%s286 + $0x18] sm:$0xff]
      %v302 = vld [vmem:[%s286 + $0x20] sm:$0xff]
      %v303 = vld [vmem:[%s286 + $0x28] sm:$0xff]
      %v304 = vld [vmem:[%s286 + $0x30] sm:$0xff]
      %v305 = vld [vmem:[%s286 + $0x38] sm:$0xff]
      %306 = vset.pattern.permute.xlu0 0
      %307 = vperm.xlu0 %306, %v298
      %v308 = vpop.permute.xlu0 %307
      %309 = vset.pattern.permute.xlu0 0
      %310 = vperm.xlu0 %309, %v299
      %v311 = vpop.permute.xlu0 %310
      %312 = vset.pattern.permute.xlu0 0
      %313 = vperm.xlu0 %312, %v300
      %v314 = vpop.permute.xlu0 %313
      %315 = vset.pattern.permute.xlu0 0
      %316 = vperm.xlu0 %315, %v301
      %v317 = vpop.permute.xlu0 %316
      %318 = vset.pattern.permute.xlu0 0
      %319 = vperm.xlu0 %318, %v302
      %v320 = vpop.permute.xlu0 %319
      %321 = vset.pattern.permute.xlu0 0
      %322 = vperm.xlu0 %321, %v303
      %v323 = vpop.permute.xlu0 %322
      %324 = vset.pattern.permute.xlu0 0
      %325 = vperm.xlu0 %324, %v304
      %v326 = vpop.permute.xlu0 %325
      %327 = vset.pattern.permute.xlu0 0
      %328 = vperm.xlu0 %327, %v305
      %v329 = vpop.permute.xlu0 %328
      %vm330 = vcmp.eq.s32.totalorder %v297, %v308
      %vm331 = vcmp.eq.s32.totalorder %v297, %v311
      %vm332 = vcmp.eq.s32.totalorder %v297, %v314
      %vm333 = vcmp.eq.s32.totalorder %v297, %v317
      %vm334 = vcmp.eq.s32.totalorder %v297, %v320
      %vm335 = vcmp.eq.s32.totalorder %v297, %v323
      %vm336 = vcmp.eq.s32.totalorder %v297, %v326
      %vm337 = vcmp.eq.s32.totalorder %v297, %v329
      %v338 = vsel %vm330, 1, 0
      %v339 = vsel %vm331, 1, 0
      %v340 = vsel %vm332, 1, 0
      %v341 = vsel %vm333, 1, 0
      %v342 = vsel %vm334, 1, 0
      %v343 = vsel %vm335, 1, 0
      %v344 = vsel %vm336, 1, 0
      %v345 = vsel %vm337, 1, 0
      %v346 = vcvt.s32.f32 %v338
      %v347 = vcvt.s32.f32 %v339
      %v348 = vcvt.s32.f32 %v340
      %v349 = vcvt.s32.f32 %v341
      %v350 = vcvt.s32.f32 %v342
      %v351 = vcvt.s32.f32 %v343
      %v352 = vcvt.s32.f32 %v344
      %v353 = vcvt.s32.f32 %v345
      %v354 = vld [vmem:[%s1] sm:$0xff]
      %v355 = vld [vmem:[%s1 + $0x8] sm:$0xff]
      %v356 = vld [vmem:[%s1 + $0x10] sm:$0xff]
      %v357 = vld [vmem:[%s1 + $0x18] sm:$0xff]
      %v358 = vld [vmem:[%s1 + $0x20] sm:$0xff]
      %v359 = vld [vmem:[%s1 + $0x28] sm:$0xff]
      %v360 = vld [vmem:[%s1 + $0x30] sm:$0xff]
      %v361 = vld [vmem:[%s1 + $0x38] sm:$0xff]
      %v362 = vld [vmem:[%s3] sm:$0xff]
      %v363 = vld [vmem:[%s3 + $0x8] sm:$0xff]
      %v364 = vld [vmem:[%s3 + $0x10] sm:$0xff]
      %v365 = vld [vmem:[%s3 + $0x18] sm:$0xff]
      %vm366 = vcmask 261120
      %v368 = vsel %vm366, %v354, 0
      %v371 = vsel %vm366, %v355, 0
      %v374 = vsel %vm366, %v356, 0
      %v377 = vsel %vm366, %v357, 0
      %v380 = vsel %vm366, %v358, 0
      %v383 = vsel %vm366, %v359, 0
      %v386 = vsel %vm366, %v360, 0
      %v389 = vsel %vm366, %v361, 0
      %391 = vmatprep.subr.mxu0 0.0
      %392 = vmatpush1.msra.mxu0 0.0
      %393 = vmatprep.subr.mxu0 0.0
      %394 = vmatpush1.msra.mxu0 0.0
      %395 = vmatprep.subr.mxu0 0.0
      %396 = vmatpush1.msra.mxu0 0.0
      %397 = vmatprep.subr.mxu0 0.0
      %398 = vmatpush1.msra.mxu0 0.0
      %399 = vmatprep.subr.mxu0 0.0
      %400 = vmatpush1.msra.mxu0 0.0
      %401 = vmatprep.subr.mxu0 0.0
      %402 = vmatpush1.msra.mxu0 0.0
      %403 = vmatprep.subr.mxu0 0.0
      %404 = vmatpush1.msra.mxu0 0.0
      %405 = vmatprep.subr.mxu0 0.0
      %406 = vmatpush1.msra.mxu0 0.0
      %407 = vmatprep.subr.mxu0 0.0
      %408 = vmatpush1.msra.mxu0 0.0
      %409 = vmatprep.subr.mxu0 0.0
      %410 = vmatpush1.msra.mxu0 0.0
      %411 = vmatprep.subr.mxu0 0.0
      %412 = vmatpush1.msra.mxu0 0.0
      %413 = vmatprep.subr.mxu0 0.0
      %414 = vmatpush1.msra.mxu0 0.0
      %415 = vmatprep.subr.mxu0 0.0
      %416 = vmatpush1.msra.mxu0 %v365
      %417 = vmatprep.subr.mxu0 0.0
      %418 = vmatpush1.msra.mxu0 %v364
      %419 = vmatprep.subr.mxu0 0.0
      %420 = vmatpush1.msra.mxu0 %v363
      %421 = vmatprep.subr.mxu0 0.0
      %422 = vmatpush1.msra.mxu0 %v362
      %423 = vmatprep.subr.mxu0 0.0
      %424 = vmatpush2.msra.mxu0 0.0
      %425 = vmatprep.subr.mxu0 0.0
      %426 = vmatpush2.msra.mxu0 0.0
      %427 = vmatprep.subr.mxu0 0.0
      %428 = vmatpush2.msra.mxu0 0.0
      %429 = vmatprep.subr.mxu0 0.0
      %430 = vmatpush2.msra.mxu0 0.0
      %431 = vmatprep.subr.mxu0 0.0
      %432 = vmatpush2.msra.mxu0 0.0
      %433 = vmatprep.subr.mxu0 0.0
      %434 = vmatpush2.msra.mxu0 0.0
      %435 = vmatprep.subr.mxu0 0.0
      %436 = vmatpush2.msra.mxu0 0.0
      %437 = vmatprep.subr.mxu0 0.0
      %438 = vmatpush2.msra.mxu0 0.0
      %439 = vmatprep.subr.mxu0 0.0
      %440 = vmatpush2.msra.mxu0 0.0
      %441 = vmatprep.subr.mxu0 0.0
      %442 = vmatpush2.msra.mxu0 0.0
      %443 = vmatprep.subr.mxu0 0.0
      %444 = vmatpush2.msra.mxu0 0.0
      %445 = vmatprep.subr.mxu0 0.0
      %446 = vmatpush2.msra.mxu0 0.0
      %447 = vmatprep.subr.mxu0 0.0
      %448 = vmatpush2.msra.mxu0 0.0
      %449 = vmatprep.subr.mxu0 0.0
      %450 = vmatpush2.msra.mxu0 0.0
      %451 = vmatprep.subr.mxu0 0.0
      %452 = vmatpush2.msra.mxu0 0.0
      %453 = vmatprep.subr.mxu0 0.0
      %454 = vmatpush2.msra.mxu0 0.0
      %455 = vmatprep.mubr.f32.mxu0 0.0
      %456 = vmatmul.mubr.f32.gmra.mxu0 %v368
      %v457 = vpop.f32.mrf.mxu0
      %v458 = vadd.f32 0.0, %v457
      %v459 = vpop.f32.mrf.mxu0
      %460 = vmatprep.mubr.f32.mxu0 0.0
      %461 = vmatmul.mubr.f32.gmra.mxu0 %v371
      %v462 = vpop.f32.mrf.mxu0
      %v463 = vadd.f32 0.0, %v462
      %v464 = vpop.f32.mrf.mxu0
      %465 = vmatprep.mubr.f32.mxu0 0.0
      %466 = vmatmul.mubr.f32.gmra.mxu0 %v374
      %v467 = vpop.f32.mrf.mxu0
      %v468 = vadd.f32 0.0, %v467
      %v469 = vpop.f32.mrf.mxu0
      %470 = vmatprep.mubr.f32.mxu0 0.0
      %471 = vmatmul.mubr.f32.gmra.mxu0 %v377
      %v472 = vpop.f32.mrf.mxu0
      %v473 = vadd.f32 0.0, %v472
      %v474 = vpop.f32.mrf.mxu0
      %475 = vmatprep.mubr.f32.mxu0 0.0
      %476 = vmatmul.mubr.f32.gmra.mxu0 %v380
      %v477 = vpop.f32.mrf.mxu0
      %v478 = vadd.f32 0.0, %v477
      %v479 = vpop.f32.mrf.mxu0
      %480 = vmatprep.mubr.f32.mxu0 0.0
      %481 = vmatmul.mubr.f32.gmra.mxu0 %v383
      %v482 = vpop.f32.mrf.mxu0
      %v483 = vadd.f32 0.0, %v482
      %v484 = vpop.f32.mrf.mxu0
      %485 = vmatprep.mubr.f32.mxu0 0.0
      %486 = vmatmul.mubr.f32.gmra.mxu0 %v386
      %v487 = vpop.f32.mrf.mxu0
      %v488 = vadd.f32 0.0, %v487
      %v489 = vpop.f32.mrf.mxu0
      %490 = vmatprep.mubr.f32.mxu0 0.0
      %491 = vmatmul.mubr.f32.gmra.mxu0 %v389
      %v492 = vpop.f32.mrf.mxu0
      %v493 = vadd.f32 0.0, %v492
      %v494 = vpop.f32.mrf.mxu0
      %495 = vdwg.mxu0
      %v496 = vld [vmem:[%s5 + $0x20] sm:$0xff]
      %v497 = vld [vmem:[%s5 + $0x28] sm:$0xff]
      %v498 = vld [vmem:[%s5 + $0x30] sm:$0xff]
      %v499 = vld [vmem:[%s5 + $0x38] sm:$0xff]
      %500 = vmatprep.subr.mxu0 0.0
      %501 = vmatpush1.msra.mxu0 0.0
      %502 = vmatprep.subr.mxu0 0.0
      %503 = vmatpush1.msra.mxu0 0.0
      %504 = vmatprep.subr.mxu0 0.0
      %505 = vmatpush1.msra.mxu0 0.0
      %506 = vmatprep.subr.mxu0 0.0
      %507 = vmatpush1.msra.mxu0 0.0
      %508 = vmatprep.subr.mxu0 0.0
      %509 = vmatpush1.msra.mxu0 0.0
      %510 = vmatprep.subr.mxu0 0.0
      %511 = vmatpush1.msra.mxu0 0.0
      %512 = vmatprep.subr.mxu0 0.0
      %513 = vmatpush1.msra.mxu0 0.0
      %514 = vmatprep.subr.mxu0 0.0
      %515 = vmatpush1.msra.mxu0 0.0
      %516 = vmatprep.subr.mxu0 0.0
      %517 = vmatpush1.msra.mxu0 0.0
      %518 = vmatprep.subr.mxu0 0.0
      %519 = vmatpush1.msra.mxu0 0.0
      %520 = vmatprep.subr.mxu0 0.0
      %521 = vmatpush1.msra.mxu0 0.0
      %522 = vmatprep.subr.mxu0 0.0
      %523 = vmatpush1.msra.mxu0 0.0
      %524 = vmatprep.subr.mxu0 0.0
      %525 = vmatpush1.msra.mxu0 %v499
      %526 = vmatprep.subr.mxu0 0.0
      %527 = vmatpush1.msra.mxu0 %v498
      %528 = vmatprep.subr.mxu0 0.0
      %529 = vmatpush1.msra.mxu0 %v497
      %530 = vmatprep.subr.mxu0 0.0
      %531 = vmatpush1.msra.mxu0 %v496
      %532 = vmatprep.subr.mxu0 0.0
      %533 = vmatpush2.msra.mxu0 0.0
      %534 = vmatprep.subr.mxu0 0.0
      %535 = vmatpush2.msra.mxu0 0.0
      %536 = vmatprep.subr.mxu0 0.0
      %537 = vmatpush2.msra.mxu0 0.0
      %538 = vmatprep.subr.mxu0 0.0
      %539 = vmatpush2.msra.mxu0 0.0
      %540 = vmatprep.subr.mxu0 0.0
      %541 = vmatpush2.msra.mxu0 0.0
      %542 = vmatprep.subr.mxu0 0.0
      %543 = vmatpush2.msra.mxu0 0.0
      %544 = vmatprep.subr.mxu0 0.0
      %545 = vmatpush2.msra.mxu0 0.0
      %546 = vmatprep.subr.mxu0 0.0
      %547 = vmatpush2.msra.mxu0 0.0
      %548 = vmatprep.subr.mxu0 0.0
      %549 = vmatpush2.msra.mxu0 0.0
      %550 = vmatprep.subr.mxu0 0.0
      %551 = vmatpush2.msra.mxu0 0.0
      %552 = vmatprep.subr.mxu0 0.0
      %553 = vmatpush2.msra.mxu0 0.0
      %554 = vmatprep.subr.mxu0 0.0
      %555 = vmatpush2.msra.mxu0 0.0
      %556 = vmatprep.subr.mxu0 0.0
      %557 = vmatpush2.msra.mxu0 0.0
      %558 = vmatprep.subr.mxu0 0.0
      %559 = vmatpush2.msra.mxu0 0.0
      %560 = vmatprep.subr.mxu0 0.0
      %561 = vmatpush2.msra.mxu0 0.0
      %562 = vmatprep.subr.mxu0 0.0
      %563 = vmatpush2.msra.mxu0 0.0
      %564 = vmatprep.mubr.f32.mxu0 0.0
      %565 = vmatmul.mubr.f32.gmra.mxu0 %v368
      %v566 = vpop.f32.mrf.mxu0
      %v567 = vadd.f32 0.0, %v566
      %v568 = vpop.f32.mrf.mxu0
      %569 = vmatprep.mubr.f32.mxu0 0.0
      %570 = vmatmul.mubr.f32.gmra.mxu0 %v371
      %v571 = vpop.f32.mrf.mxu0
      %v572 = vadd.f32 0.0, %v571
      %v573 = vpop.f32.mrf.mxu0
      %574 = vmatprep.mubr.f32.mxu0 0.0
      %575 = vmatmul.mubr.f32.gmra.mxu0 %v374
      %v576 = vpop.f32.mrf.mxu0
      %v577 = vadd.f32 0.0, %v576
      %v578 = vpop.f32.mrf.mxu0
      %579 = vmatprep.mubr.f32.mxu0 0.0
      %580 = vmatmul.mubr.f32.gmra.mxu0 %v377
      %v581 = vpop.f32.mrf.mxu0
      %v582 = vadd.f32 0.0, %v581
      %v583 = vpop.f32.mrf.mxu0
      %584 = vmatprep.mubr.f32.mxu0 0.0
      %585 = vmatmul.mubr.f32.gmra.mxu0 %v380
      %v586 = vpop.f32.mrf.mxu0
      %v587 = vadd.f32 0.0, %v586
      %v588 = vpop.f32.mrf.mxu0
      %589 = vmatprep.mubr.f32.mxu0 0.0
      %590 = vmatmul.mubr.f32.gmra.mxu0 %v383
      %v591 = vpop.f32.mrf.mxu0
      %v592 = vadd.f32 0.0, %v591
      %v593 = vpop.f32.mrf.mxu0
      %594 = vmatprep.mubr.f32.mxu0 0.0
      %595 = vmatmul.mubr.f32.gmra.mxu0 %v386
      %v596 = vpop.f32.mrf.mxu0
      %v597 = vadd.f32 0.0, %v596
      %v598 = vpop.f32.mrf.mxu0
      %599 = vmatprep.mubr.f32.mxu0 0.0
      %600 = vmatmul.mubr.f32.gmra.mxu0 %v389
      %v601 = vpop.f32.mrf.mxu0
      %v602 = vadd.f32 0.0, %v601
      %v603 = vpop.f32.mrf.mxu0
      %604 = vdwg.mxu0
      %v605 = vld [vmem:[%s4] sm:$0x1]
      %v607 = vlaneseq
      %v608 = vshrl.u32 %v607, 7
      %v609 = vsub.s32 0, %v608
      %v610 = vrot.slane %v605, %v609
      %vm612 = vcmask 523264
      %v614 = vsel %vm612, %v346, 0
      %v617 = vsel %vm612, %v347, 0
      %v620 = vsel %vm612, %v348, 0
      %v623 = vsel %vm612, %v349, 0
      %v626 = vsel %vm612, %v350, 0
      %v629 = vsel %vm612, %v351, 0
      %v632 = vsel %vm612, %v352, 0
      %v635 = vsel %vm612, %v353, 0
      %637 = vmatprep.subr.mxu0 0.0
      %638 = vmatpush1.msra.mxu0 0.0
      %639 = vmatprep.subr.mxu0 0.0
      %640 = vmatpush1.msra.mxu0 0.0
      %641 = vmatprep.subr.mxu0 0.0
      %642 = vmatpush1.msra.mxu0 0.0
      %643 = vmatprep.subr.mxu0 0.0
      %644 = vmatpush1.msra.mxu0 0.0
      %645 = vmatprep.subr.mxu0 0.0
      %646 = vmatpush1.msra.mxu0 0.0
      %647 = vmatprep.subr.mxu0 0.0
      %648 = vmatpush1.msra.mxu0 0.0
      %649 = vmatprep.subr.mxu0 0.0
      %650 = vmatpush1.msra.mxu0 0.0
      %651 = vmatprep.subr.mxu0 0.0
      %652 = vmatpush1.msra.mxu0 0.0
      %653 = vmatprep.subr.mxu0 0.0
      %654 = vmatpush1.msra.mxu0 %v493
      %655 = vmatprep.subr.mxu0 0.0
      %656 = vmatpush1.msra.mxu0 %v488
      %657 = vmatprep.subr.mxu0 0.0
      %658 = vmatpush1.msra.mxu0 %v483
      %659 = vmatprep.subr.mxu0 0.0
      %660 = vmatpush1.msra.mxu0 %v478
      %661 = vmatprep.subr.mxu0 0.0
      %662 = vmatpush1.msra.mxu0 %v473
      %663 = vmatprep.subr.mxu0 0.0
      %664 = vmatpush1.msra.mxu0 %v468
      %665 = vmatprep.subr.mxu0 0.0
      %666 = vmatpush1.msra.mxu0 %v463
      %667 = vmatprep.subr.mxu0 0.0
      %668 = vmatpush1.msra.mxu0 %v458
      %669 = vmatprep.subr.mxu0 0.0
      %670 = vmatpush2.msra.mxu0 0.0
      %671 = vmatprep.subr.mxu0 0.0
      %672 = vmatpush2.msra.mxu0 0.0
      %673 = vmatprep.subr.mxu0 0.0
      %674 = vmatpush2.msra.mxu0 0.0
      %675 = vmatprep.subr.mxu0 0.0
      %676 = vmatpush2.msra.mxu0 0.0
      %677 = vmatprep.subr.mxu0 0.0
      %678 = vmatpush2.msra.mxu0 0.0
      %679 = vmatprep.subr.mxu0 0.0
      %680 = vmatpush2.msra.mxu0 0.0
      %681 = vmatprep.subr.mxu0 0.0
      %682 = vmatpush2.msra.mxu0 0.0
      %683 = vmatprep.subr.mxu0 0.0
      %684 = vmatpush2.msra.mxu0 0.0
      %685 = vmatprep.subr.mxu0 0.0
      %686 = vmatpush2.msra.mxu0 0.0
      %687 = vmatprep.subr.mxu0 0.0
      %688 = vmatpush2.msra.mxu0 0.0
      %689 = vmatprep.subr.mxu0 0.0
      %690 = vmatpush2.msra.mxu0 0.0
      %691 = vmatprep.subr.mxu0 0.0
      %692 = vmatpush2.msra.mxu0 0.0
      %693 = vmatprep.subr.mxu0 0.0
      %694 = vmatpush2.msra.mxu0 0.0
      %695 = vmatprep.subr.mxu0 0.0
      %696 = vmatpush2.msra.mxu0 0.0
      %697 = vmatprep.subr.mxu0 0.0
      %698 = vmatpush2.msra.mxu0 0.0
      %699 = vmatprep.subr.mxu0 0.0
      %700 = vmatpush2.msra.mxu0 0.0
      %701 = vmatprep.mubr.f32.mxu0 0.0
      %702 = vmatmul.mubr.f32.gmra.mxu0 %v614
      %v703 = vpop.f32.mrf.mxu0
      %v704 = vadd.f32 %v610, %v703
      %v705 = vpop.f32.mrf.mxu0
      %706 = vmatprep.mubr.f32.mxu0 0.0
      %707 = vmatmul.mubr.f32.gmra.mxu0 %v617
      %v708 = vpop.f32.mrf.mxu0
      %v709 = vadd.f32 %v610, %v708
      %v710 = vpop.f32.mrf.mxu0
      %711 = vmatprep.mubr.f32.mxu0 0.0
      %712 = vmatmul.mubr.f32.gmra.mxu0 %v620
      %v713 = vpop.f32.mrf.mxu0
      %v714 = vadd.f32 %v610, %v713
      %v715 = vpop.f32.mrf.mxu0
      %716 = vmatprep.mubr.f32.mxu0 0.0
      %717 = vmatmul.mubr.f32.gmra.mxu0 %v623
      %v718 = vpop.f32.mrf.mxu0
      %v719 = vadd.f32 %v610, %v718
      %v720 = vpop.f32.mrf.mxu0
      %721 = vmatprep.mubr.f32.mxu0 0.0
      %722 = vmatmul.mubr.f32.gmra.mxu0 %v626
      %v723 = vpop.f32.mrf.mxu0
      %v724 = vadd.f32 %v610, %v723
      %v725 = vpop.f32.mrf.mxu0
      %726 = vmatprep.mubr.f32.mxu0 0.0
      %727 = vmatmul.mubr.f32.gmra.mxu0 %v629
      %v728 = vpop.f32.mrf.mxu0
      %v729 = vadd.f32 %v610, %v728
      %v730 = vpop.f32.mrf.mxu0
      %731 = vmatprep.mubr.f32.mxu0 0.0
      %732 = vmatmul.mubr.f32.gmra.mxu0 %v632
      %v733 = vpop.f32.mrf.mxu0
      %v734 = vadd.f32 %v610, %v733
      %v735 = vpop.f32.mrf.mxu0
      %736 = vmatprep.mubr.f32.mxu0 0.0
      %737 = vmatmul.mubr.f32.gmra.mxu0 %v635
      %v738 = vpop.f32.mrf.mxu0
      %v739 = vadd.f32 %v610, %v738
      %v740 = vpop.f32.mrf.mxu0
      %741 = vdwg.mxu0
      %v742 = vld [vmem:[%s6] sm:$0x1]
      %v744 = vlaneseq
      %v745 = vshrl.u32 %v744, 7
      %v746 = vsub.s32 0, %v745
      %v747 = vrot.slane %v742, %v746
      %749 = vmatprep.subr.mxu0 0.0
      %750 = vmatpush1.msra.mxu0 0.0
      %751 = vmatprep.subr.mxu0 0.0
      %752 = vmatpush1.msra.mxu0 0.0
      %753 = vmatprep.subr.mxu0 0.0
      %754 = vmatpush1.msra.mxu0 0.0
      %755 = vmatprep.subr.mxu0 0.0
      %756 = vmatpush1.msra.mxu0 0.0
      %757 = vmatprep.subr.mxu0 0.0
      %758 = vmatpush1.msra.mxu0 0.0
      %759 = vmatprep.subr.mxu0 0.0
      %760 = vmatpush1.msra.mxu0 0.0
      %761 = vmatprep.subr.mxu0 0.0
      %762 = vmatpush1.msra.mxu0 0.0
      %763 = vmatprep.subr.mxu0 0.0
      %764 = vmatpush1.msra.mxu0 0.0
      %765 = vmatprep.subr.mxu0 0.0
      %766 = vmatpush1.msra.mxu0 %v602
      %767 = vmatprep.subr.mxu0 0.0
      %768 = vmatpush1.msra.mxu0 %v597
      %769 = vmatprep.subr.mxu0 0.0
      %770 = vmatpush1.msra.mxu0 %v592
      %771 = vmatprep.subr.mxu0 0.0
      %772 = vmatpush1.msra.mxu0 %v587
      %773 = vmatprep.subr.mxu0 0.0
      %774 = vmatpush1.msra.mxu0 %v582
      %775 = vmatprep.subr.mxu0 0.0
      %776 = vmatpush1.msra.mxu0 %v577
      %777 = vmatprep.subr.mxu0 0.0
      %778 = vmatpush1.msra.mxu0 %v572
      %779 = vmatprep.subr.mxu0 0.0
      %780 = vmatpush1.msra.mxu0 %v567
      %781 = vmatprep.subr.mxu0 0.0
      %782 = vmatpush2.msra.mxu0 0.0
      %783 = vmatprep.subr.mxu0 0.0
      %784 = vmatpush2.msra.mxu0 0.0
      %785 = vmatprep.subr.mxu0 0.0
      %786 = vmatpush2.msra.mxu0 0.0
      %787 = vmatprep.subr.mxu0 0.0
      %788 = vmatpush2.msra.mxu0 0.0
      %789 = vmatprep.subr.mxu0 0.0
      %790 = vmatpush2.msra.mxu0 0.0
      %791 = vmatprep.subr.mxu0 0.0
      %792 = vmatpush2.msra.mxu0 0.0
      %793 = vmatprep.subr.mxu0 0.0
      %794 = vmatpush2.msra.mxu0 0.0
      %795 = vmatprep.subr.mxu0 0.0
      %796 = vmatpush2.msra.mxu0 0.0
      %797 = vmatprep.subr.mxu0 0.0
      %798 = vmatpush2.msra.mxu0 0.0
      %799 = vmatprep.subr.mxu0 0.0
      %800 = vmatpush2.msra.mxu0 0.0
      %801 = vmatprep.subr.mxu0 0.0
      %802 = vmatpush2.msra.mxu0 0.0
      %803 = vmatprep.subr.mxu0 0.0
      %804 = vmatpush2.msra.mxu0 0.0
      %805 = vmatprep.subr.mxu0 0.0
      %806 = vmatpush2.msra.mxu0 0.0
      %807 = vmatprep.subr.mxu0 0.0
      %808 = vmatpush2.msra.mxu0 0.0
      %809 = vmatprep.subr.mxu0 0.0
      %810 = vmatpush2.msra.mxu0 0.0
      %811 = vmatprep.subr.mxu0 0.0
      %812 = vmatpush2.msra.mxu0 0.0
      %813 = vmatprep.mubr.f32.mxu0 0.0
      %814 = vmatmul.mubr.f32.gmra.mxu0 %v614
      %v815 = vpop.f32.mrf.mxu0
      %v816 = vadd.f32 %v747, %v815
      %v817 = vpop.f32.mrf.mxu0
      %818 = vmatprep.mubr.f32.mxu0 0.0
      %819 = vmatmul.mubr.f32.gmra.mxu0 %v617
      %v820 = vpop.f32.mrf.mxu0
      %v821 = vadd.f32 %v747, %v820
      %v822 = vpop.f32.mrf.mxu0
      %823 = vmatprep.mubr.f32.mxu0 0.0
      %824 = vmatmul.mubr.f32.gmra.mxu0 %v620
      %v825 = vpop.f32.mrf.mxu0
      %v826 = vadd.f32 %v747, %v825
      %v827 = vpop.f32.mrf.mxu0
      %828 = vmatprep.mubr.f32.mxu0 0.0
      %829 = vmatmul.mubr.f32.gmra.mxu0 %v623
      %v830 = vpop.f32.mrf.mxu0
      %v831 = vadd.f32 %v747, %v830
      %v832 = vpop.f32.mrf.mxu0
      %833 = vmatprep.mubr.f32.mxu0 0.0
      %834 = vmatmul.mubr.f32.gmra.mxu0 %v626
      %v835 = vpop.f32.mrf.mxu0
      %v836 = vadd.f32 %v747, %v835
      %v837 = vpop.f32.mrf.mxu0
      %838 = vmatprep.mubr.f32.mxu0 0.0
      %839 = vmatmul.mubr.f32.gmra.mxu0 %v629
      %v840 = vpop.f32.mrf.mxu0
      %v841 = vadd.f32 %v747, %v840
      %v842 = vpop.f32.mrf.mxu0
      %843 = vmatprep.mubr.f32.mxu0 0.0
      %844 = vmatmul.mubr.f32.gmra.mxu0 %v632
      %v845 = vpop.f32.mrf.mxu0
      %v846 = vadd.f32 %v747, %v845
      %v847 = vpop.f32.mrf.mxu0
      %848 = vmatprep.mubr.f32.mxu0 0.0
      %849 = vmatmul.mubr.f32.gmra.mxu0 %v635
      %v850 = vpop.f32.mrf.mxu0
      %v851 = vadd.f32 %v747, %v850
      %v852 = vpop.f32.mrf.mxu0
      %853 = vdwg.mxu0
      %v854 = vld [vmem:[%s3 + $0x20] sm:$0xff]
      %v855 = vld [vmem:[%s3 + $0x28] sm:$0xff]
      %v856 = vld [vmem:[%s3 + $0x30] sm:$0xff]
      %v857 = vld [vmem:[%s3 + $0x38] sm:$0xff]
      %v858 = vld [vmem:[%s5] sm:$0xff]
      %v859 = vld [vmem:[%s5 + $0x8] sm:$0xff]
      %v860 = vld [vmem:[%s5 + $0x10] sm:$0xff]
      %v861 = vld [vmem:[%s5 + $0x18] sm:$0xff]
      %v862 = vld [vmem:[%s290] sm:$0xff]
      %v864 = vsel %vm366, %v862, 0
      %866 = vmatprep.subr.mxu0 0.0
      %867 = vmatpush1.msra.mxu0 0.0
      %868 = vmatprep.subr.mxu0 0.0
      %869 = vmatpush1.msra.mxu0 0.0
      %870 = vmatprep.subr.mxu0 0.0
      %871 = vmatpush1.msra.mxu0 0.0
      %872 = vmatprep.subr.mxu0 0.0
      %873 = vmatpush1.msra.mxu0 0.0
      %874 = vmatprep.subr.mxu0 0.0
      %875 = vmatpush1.msra.mxu0 0.0
      %876 = vmatprep.subr.mxu0 0.0
      %877 = vmatpush1.msra.mxu0 0.0
      %878 = vmatprep.subr.mxu0 0.0
      %879 = vmatpush1.msra.mxu0 0.0
      %880 = vmatprep.subr.mxu0 0.0
      %881 = vmatpush1.msra.mxu0 0.0
      %882 = vmatprep.subr.mxu0 0.0
      %883 = vmatpush1.msra.mxu0 0.0
      %884 = vmatprep.subr.mxu0 0.0
      %885 = vmatpush1.msra.mxu0 0.0
      %886 = vmatprep.subr.mxu0 0.0
      %887 = vmatpush1.msra.mxu0 0.0
      %888 = vmatprep.subr.mxu0 0.0
      %889 = vmatpush1.msra.mxu0 0.0
      %890 = vmatprep.subr.mxu0 0.0
      %891 = vmatpush1.msra.mxu0 %v857
      %892 = vmatprep.subr.mxu0 0.0
      %893 = vmatpush1.msra.mxu0 %v856
      %894 = vmatprep.subr.mxu0 0.0
      %895 = vmatpush1.msra.mxu0 %v855
      %896 = vmatprep.subr.mxu0 0.0
      %897 = vmatpush1.msra.mxu0 %v854
      %898 = vmatprep.subr.mxu0 0.0
      %899 = vmatpush2.msra.mxu0 0.0
      %900 = vmatprep.subr.mxu0 0.0
      %901 = vmatpush2.msra.mxu0 0.0
      %902 = vmatprep.subr.mxu0 0.0
      %903 = vmatpush2.msra.mxu0 0.0
      %904 = vmatprep.subr.mxu0 0.0
      %905 = vmatpush2.msra.mxu0 0.0
      %906 = vmatprep.subr.mxu0 0.0
      %907 = vmatpush2.msra.mxu0 0.0
      %908 = vmatprep.subr.mxu0 0.0
      %909 = vmatpush2.msra.mxu0 0.0
      %910 = vmatprep.subr.mxu0 0.0
      %911 = vmatpush2.msra.mxu0 0.0
      %912 = vmatprep.subr.mxu0 0.0
      %913 = vmatpush2.msra.mxu0 0.0
      %914 = vmatprep.subr.mxu0 0.0
      %915 = vmatpush2.msra.mxu0 0.0
      %916 = vmatprep.subr.mxu0 0.0
      %917 = vmatpush2.msra.mxu0 0.0
      %918 = vmatprep.subr.mxu0 0.0
      %919 = vmatpush2.msra.mxu0 0.0
      %920 = vmatprep.subr.mxu0 0.0
      %921 = vmatpush2.msra.mxu0 0.0
      %922 = vmatprep.subr.mxu0 0.0
      %923 = vmatpush2.msra.mxu0 0.0
      %924 = vmatprep.subr.mxu0 0.0
      %925 = vmatpush2.msra.mxu0 0.0
      %926 = vmatprep.subr.mxu0 0.0
      %927 = vmatpush2.msra.mxu0 0.0
      %928 = vmatprep.subr.mxu0 0.0
      %929 = vmatpush2.msra.mxu0 0.0
      %930 = vmatprep.mubr.f32.mxu0 0.0
      %931 = vmatmul.mubr.f32.gmra.mxu0 %v864
      %v932 = vpop.f32.mrf.mxu0
      %v933 = vadd.f32 0.0, %v932
      %v934 = vpop.f32.mrf.mxu0
      %935 = vdwg.mxu0
      %v936 = vadd.f32 %v704, %v933
      %v937 = vxor.u32 %v936, 2147483648
      %v938 = vmul.f32 %v937, 1.442695
      %v939 = vpow.pop %v938
      %v940 = vadd.f32 %v939, 1.0
      %v941 = vrcp.pop %v940
      %v942 = vmul.f32 1.0, %v941
      %v943 = vmul.f32 %v942, %v862
      %v945 = vsel %vm366, %v943, 0
      %947 = vmatprep.subr.mxu0 0.0
      %948 = vmatpush1.msra.mxu0 0.0
      %949 = vmatprep.subr.mxu0 0.0
      %950 = vmatpush1.msra.mxu0 0.0
      %951 = vmatprep.subr.mxu0 0.0
      %952 = vmatpush1.msra.mxu0 0.0
      %953 = vmatprep.subr.mxu0 0.0
      %954 = vmatpush1.msra.mxu0 0.0
      %955 = vmatprep.subr.mxu0 0.0
      %956 = vmatpush1.msra.mxu0 0.0
      %957 = vmatprep.subr.mxu0 0.0
      %958 = vmatpush1.msra.mxu0 0.0
      %959 = vmatprep.subr.mxu0 0.0
      %960 = vmatpush1.msra.mxu0 0.0
      %961 = vmatprep.subr.mxu0 0.0
      %962 = vmatpush1.msra.mxu0 0.0
      %963 = vmatprep.subr.mxu0 0.0
      %964 = vmatpush1.msra.mxu0 0.0
      %965 = vmatprep.subr.mxu0 0.0
      %966 = vmatpush1.msra.mxu0 0.0
      %967 = vmatprep.subr.mxu0 0.0
      %968 = vmatpush1.msra.mxu0 0.0
      %969 = vmatprep.subr.mxu0 0.0
      %970 = vmatpush1.msra.mxu0 0.0
      %971 = vmatprep.subr.mxu0 0.0
      %972 = vmatpush1.msra.mxu0 %v861
      %973 = vmatprep.subr.mxu0 0.0
      %974 = vmatpush1.msra.mxu0 %v860
      %975 = vmatprep.subr.mxu0 0.0
      %976 = vmatpush1.msra.mxu0 %v859
      %977 = vmatprep.subr.mxu0 0.0
      %978 = vmatpush1.msra.mxu0 %v858
      %979 = vmatprep.subr.mxu0 0.0
      %980 = vmatpush2.msra.mxu0 0.0
      %981 = vmatprep.subr.mxu0 0.0
      %982 = vmatpush2.msra.mxu0 0.0
      %983 = vmatprep.subr.mxu0 0.0
      %984 = vmatpush2.msra.mxu0 0.0
      %985 = vmatprep.subr.mxu0 0.0
      %986 = vmatpush2.msra.mxu0 0.0
      %987 = vmatprep.subr.mxu0 0.0
      %988 = vmatpush2.msra.mxu0 0.0
      %989 = vmatprep.subr.mxu0 0.0
      %990 = vmatpush2.msra.mxu0 0.0
      %991 = vmatprep.subr.mxu0 0.0
      %992 = vmatpush2.msra.mxu0 0.0
      %993 = vmatprep.subr.mxu0 0.0
      %994 = vmatpush2.msra.mxu0 0.0
      %995 = vmatprep.subr.mxu0 0.0
      %996 = vmatpush2.msra.mxu0 0.0
      %997 = vmatprep.subr.mxu0 0.0
      %998 = vmatpush2.msra.mxu0 0.0
      %999 = vmatprep.subr.mxu0 0.0
      %1000 = vmatpush2.msra.mxu0 0.0
      %1001 = vmatprep.subr.mxu0 0.0
      %1002 = vmatpush2.msra.mxu0 0.0
      %1003 = vmatprep.subr.mxu0 0.0
      %1004 = vmatpush2.msra.mxu0 0.0
      %1005 = vmatprep.subr.mxu0 0.0
      %1006 = vmatpush2.msra.mxu0 0.0
      %1007 = vmatprep.subr.mxu0 0.0
      %1008 = vmatpush2.msra.mxu0 0.0
      %1009 = vmatprep.subr.mxu0 0.0
      %1010 = vmatpush2.msra.mxu0 0.0
      %1011 = vmatprep.mubr.f32.mxu0 0.0
      %1012 = vmatmul.mubr.f32.gmra.mxu0 %v945
      %v1013 = vpop.f32.mrf.mxu0
      %v1014 = vadd.f32 0.0, %v1013
      %v1015 = vpop.f32.mrf.mxu0
      %1016 = vdwg.mxu0
      %v1017 = vadd.f32 %v816, %v1014
      %v1018 = vtanh.pop %v1017
      %v1020 = vsel %vm366, %v1018, 0
      %1022 = vmatprep.subr.mxu0 0.0
      %1023 = vmatpush1.msra.mxu0 0.0
      %1024 = vmatprep.subr.mxu0 0.0
      %1025 = vmatpush1.msra.mxu0 0.0
      %1026 = vmatprep.subr.mxu0 0.0
      %1027 = vmatpush1.msra.mxu0 0.0
      %1028 = vmatprep.subr.mxu0 0.0
      %1029 = vmatpush1.msra.mxu0 0.0
      %1030 = vmatprep.subr.mxu0 0.0
      %1031 = vmatpush1.msra.mxu0 0.0
      %1032 = vmatprep.subr.mxu0 0.0
      %1033 = vmatpush1.msra.mxu0 0.0
      %1034 = vmatprep.subr.mxu0 0.0
      %1035 = vmatpush1.msra.mxu0 0.0
      %1036 = vmatprep.subr.mxu0 0.0
      %1037 = vmatpush1.msra.mxu0 0.0
      %1038 = vmatprep.subr.mxu0 0.0
      %1039 = vmatpush1.msra.mxu0 0.0
      %1040 = vmatprep.subr.mxu0 0.0
      %1041 = vmatpush1.msra.mxu0 0.0
      %1042 = vmatprep.subr.mxu0 0.0
      %1043 = vmatpush1.msra.mxu0 0.0
      %1044 = vmatprep.subr.mxu0 0.0
      %1045 = vmatpush1.msra.mxu0 0.0
      %1046 = vmatprep.subr.mxu0 0.0
      %1047 = vmatpush1.msra.mxu0 %v857
      %1048 = vmatprep.subr.mxu0 0.0
      %1049 = vmatpush1.msra.mxu0 %v856
      %1050 = vmatprep.subr.mxu0 0.0
      %1051 = vmatpush1.msra.mxu0 %v855
      %1052 = vmatprep.subr.mxu0 0.0
      %1053 = vmatpush1.msra.mxu0 %v854
      %1054 = vmatprep.subr.mxu0 0.0
      %1055 = vmatpush2.msra.mxu0 0.0
      %1056 = vmatprep.subr.mxu0 0.0
      %1057 = vmatpush2.msra.mxu0 0.0
      %1058 = vmatprep.subr.mxu0 0.0
      %1059 = vmatpush2.msra.mxu0 0.0
      %1060 = vmatprep.subr.mxu0 0.0
      %1061 = vmatpush2.msra.mxu0 0.0
      %1062 = vmatprep.subr.mxu0 0.0
      %1063 = vmatpush2.msra.mxu0 0.0
      %1064 = vmatprep.subr.mxu0 0.0
      %1065 = vmatpush2.msra.mxu0 0.0
      %1066 = vmatprep.subr.mxu0 0.0
      %1067 = vmatpush2.msra.mxu0 0.0
      %1068 = vmatprep.subr.mxu0 0.0
      %1069 = vmatpush2.msra.mxu0 0.0
      %1070 = vmatprep.subr.mxu0 0.0
      %1071 = vmatpush2.msra.mxu0 0.0
      %1072 = vmatprep.subr.mxu0 0.0
      %1073 = vmatpush2.msra.mxu0 0.0
      %1074 = vmatprep.subr.mxu0 0.0
      %1075 = vmatpush2.msra.mxu0 0.0
      %1076 = vmatprep.subr.mxu0 0.0
      %1077 = vmatpush2.msra.mxu0 0.0
      %1078 = vmatprep.subr.mxu0 0.0
      %1079 = vmatpush2.msra.mxu0 0.0
      %1080 = vmatprep.subr.mxu0 0.0
      %1081 = vmatpush2.msra.mxu0 0.0
      %1082 = vmatprep.subr.mxu0 0.0
      %1083 = vmatpush2.msra.mxu0 0.0
      %1084 = vmatprep.subr.mxu0 0.0
      %1085 = vmatpush2.msra.mxu0 0.0
      %1086 = vmatprep.mubr.f32.mxu0 0.0
      %1087 = vmatmul.mubr.f32.gmra.mxu0 %v1020
      %v1088 = vpop.f32.mrf.mxu0
      %v1089 = vadd.f32 0.0, %v1088
      %v1090 = vpop.f32.mrf.mxu0
      %1091 = vdwg.mxu0
      %v1092 = vadd.f32 %v709, %v1089
      %v1093 = vxor.u32 %v1092, 2147483648
      %v1094 = vmul.f32 %v1093, 1.442695
      %v1095 = vpow.pop %v1094
      %v1096 = vadd.f32 %v1095, 1.0
      %v1097 = vrcp.pop %v1096
      %v1098 = vmul.f32 1.0, %v1097
      %v1099 = vmul.f32 %v1098, %v1018
      %v1101 = vsel %vm366, %v1099, 0
      %1103 = vmatprep.subr.mxu0 0.0
      %1104 = vmatpush1.msra.mxu0 0.0
      %1105 = vmatprep.subr.mxu0 0.0
      %1106 = vmatpush1.msra.mxu0 0.0
      %1107 = vmatprep.subr.mxu0 0.0
      %1108 = vmatpush1.msra.mxu0 0.0
      %1109 = vmatprep.subr.mxu0 0.0
      %1110 = vmatpush1.msra.mxu0 0.0
      %1111 = vmatprep.subr.mxu0 0.0
      %1112 = vmatpush1.msra.mxu0 0.0
      %1113 = vmatprep.subr.mxu0 0.0
      %1114 = vmatpush1.msra.mxu0 0.0
      %1115 = vmatprep.subr.mxu0 0.0
      %1116 = vmatpush1.msra.mxu0 0.0
      %1117 = vmatprep.subr.mxu0 0.0
      %1118 = vmatpush1.msra.mxu0 0.0
      %1119 = vmatprep.subr.mxu0 0.0
      %1120 = vmatpush1.msra.mxu0 0.0
      %1121 = vmatprep.subr.mxu0 0.0
      %1122 = vmatpush1.msra.mxu0 0.0
      %1123 = vmatprep.subr.mxu0 0.0
      %1124 = vmatpush1.msra.mxu0 0.0
      %1125 = vmatprep.subr.mxu0 0.0
      %1126 = vmatpush1.msra.mxu0 0.0
      %1127 = vmatprep.subr.mxu0 0.0
      %1128 = vmatpush1.msra.mxu0 %v861
      %1129 = vmatprep.subr.mxu0 0.0
      %1130 = vmatpush1.msra.mxu0 %v860
      %1131 = vmatprep.subr.mxu0 0.0
      %1132 = vmatpush1.msra.mxu0 %v859
      %1133 = vmatprep.subr.mxu0 0.0
      %1134 = vmatpush1.msra.mxu0 %v858
      %1135 = vmatprep.subr.mxu0 0.0
      %1136 = vmatpush2.msra.mxu0 0.0
      %1137 = vmatprep.subr.mxu0 0.0
      %1138 = vmatpush2.msra.mxu0 0.0
      %1139 = vmatprep.subr.mxu0 0.0
      %1140 = vmatpush2.msra.mxu0 0.0
      %1141 = vmatprep.subr.mxu0 0.0
      %1142 = vmatpush2.msra.mxu0 0.0
      %1143 = vmatprep.subr.mxu0 0.0
      %1144 = vmatpush2.msra.mxu0 0.0
      %1145 = vmatprep.subr.mxu0 0.0
      %1146 = vmatpush2.msra.mxu0 0.0
      %1147 = vmatprep.subr.mxu0 0.0
      %1148 = vmatpush2.msra.mxu0 0.0
      %1149 = vmatprep.subr.mxu0 0.0
      %1150 = vmatpush2.msra.mxu0 0.0
      %1151 = vmatprep.subr.mxu0 0.0
      %1152 = vmatpush2.msra.mxu0 0.0
      %1153 = vmatprep.subr.mxu0 0.0
      %1154 = vmatpush2.msra.mxu0 0.0
      %1155 = vmatprep.subr.mxu0 0.0
      %1156 = vmatpush2.msra.mxu0 0.0
      %1157 = vmatprep.subr.mxu0 0.0
      %1158 = vmatpush2.msra.mxu0 0.0
      %1159 = vmatprep.subr.mxu0 0.0
      %1160 = vmatpush2.msra.mxu0 0.0
      %1161 = vmatprep.subr.mxu0 0.0
      %1162 = vmatpush2.msra.mxu0 0.0
      %1163 = vmatprep.subr.mxu0 0.0
      %1164 = vmatpush2.msra.mxu0 0.0
      %1165 = vmatprep.subr.mxu0 0.0
      %1166 = vmatpush2.msra.mxu0 0.0
      %1167 = vmatprep.mubr.f32.mxu0 0.0
      %1168 = vmatmul.mubr.f32.gmra.mxu0 %v1101
      %v1169 = vpop.f32.mrf.mxu0
      %v1170 = vadd.f32 0.0, %v1169
      %v1171 = vpop.f32.mrf.mxu0
      %1172 = vdwg.mxu0
      %v1173 = vadd.f32 %v821, %v1170
      %v1174 = vtanh.pop %v1173
      %v1176 = vsel %vm366, %v1174, 0
      %1178 = vmatprep.subr.mxu0 0.0
      %1179 = vmatpush1.msra.mxu0 0.0
      %1180 = vmatprep.subr.mxu0 0.0
      %1181 = vmatpush1.msra.mxu0 0.0
      %1182 = vmatprep.subr.mxu0 0.0
      %1183 = vmatpush1.msra.mxu0 0.0
      %1184 = vmatprep.subr.mxu0 0.0
      %1185 = vmatpush1.msra.mxu0 0.0
      %1186 = vmatprep.subr.mxu0 0.0
      %1187 = vmatpush1.msra.mxu0 0.0
      %1188 = vmatprep.subr.mxu0 0.0
      %1189 = vmatpush1.msra.mxu0 0.0
      %1190 = vmatprep.subr.mxu0 0.0
      %1191 = vmatpush1.msra.mxu0 0.0
      %1192 = vmatprep.subr.mxu0 0.0
      %1193 = vmatpush1.msra.mxu0 0.0
      %1194 = vmatprep.subr.mxu0 0.0
      %1195 = vmatpush1.msra.mxu0 0.0
      %1196 = vmatprep.subr.mxu0 0.0
      %1197 = vmatpush1.msra.mxu0 0.0
      %1198 = vmatprep.subr.mxu0 0.0
      %1199 = vmatpush1.msra.mxu0 0.0
      %1200 = vmatprep.subr.mxu0 0.0
      %1201 = vmatpush1.msra.mxu0 0.0
      %1202 = vmatprep.subr.mxu0 0.0
      %1203 = vmatpush1.msra.mxu0 %v857
      %1204 = vmatprep.subr.mxu0 0.0
      %1205 = vmatpush1.msra.mxu0 %v856
      %1206 = vmatprep.subr.mxu0 0.0
      %1207 = vmatpush1.msra.mxu0 %v855
      %1208 = vmatprep.subr.mxu0 0.0
      %1209 = vmatpush1.msra.mxu0 %v854
      %1210 = vmatprep.subr.mxu0 0.0
      %1211 = vmatpush2.msra.mxu0 0.0
      %1212 = vmatprep.subr.mxu0 0.0
      %1213 = vmatpush2.msra.mxu0 0.0
      %1214 = vmatprep.subr.mxu0 0.0
      %1215 = vmatpush2.msra.mxu0 0.0
      %1216 = vmatprep.subr.mxu0 0.0
      %1217 = vmatpush2.msra.mxu0 0.0
      %1218 = vmatprep.subr.mxu0 0.0
      %1219 = vmatpush2.msra.mxu0 0.0
      %1220 = vmatprep.subr.mxu0 0.0
      %1221 = vmatpush2.msra.mxu0 0.0
      %1222 = vmatprep.subr.mxu0 0.0
      %1223 = vmatpush2.msra.mxu0 0.0
      %1224 = vmatprep.subr.mxu0 0.0
      %1225 = vmatpush2.msra.mxu0 0.0
      %1226 = vmatprep.subr.mxu0 0.0
      %1227 = vmatpush2.msra.mxu0 0.0
      %1228 = vmatprep.subr.mxu0 0.0
      %1229 = vmatpush2.msra.mxu0 0.0
      %1230 = vmatprep.subr.mxu0 0.0
      %1231 = vmatpush2.msra.mxu0 0.0
      %1232 = vmatprep.subr.mxu0 0.0
      %1233 = vmatpush2.msra.mxu0 0.0
      %1234 = vmatprep.subr.mxu0 0.0
      %1235 = vmatpush2.msra.mxu0 0.0
      %1236 = vmatprep.subr.mxu0 0.0
      %1237 = vmatpush2.msra.mxu0 0.0
      %1238 = vmatprep.subr.mxu0 0.0
      %1239 = vmatpush2.msra.mxu0 0.0
      %1240 = vmatprep.subr.mxu0 0.0
      %1241 = vmatpush2.msra.mxu0 0.0
      %1242 = vmatprep.mubr.f32.mxu0 0.0
      %1243 = vmatmul.mubr.f32.gmra.mxu0 %v1176
      %v1244 = vpop.f32.mrf.mxu0
      %v1245 = vadd.f32 0.0, %v1244
      %v1246 = vpop.f32.mrf.mxu0
      %1247 = vdwg.mxu0
      %v1248 = vadd.f32 %v714, %v1245
      %v1249 = vxor.u32 %v1248, 2147483648
      %v1250 = vmul.f32 %v1249, 1.442695
      %v1251 = vpow.pop %v1250
      %v1252 = vadd.f32 %v1251, 1.0
      %v1253 = vrcp.pop %v1252
      %v1254 = vmul.f32 1.0, %v1253
      %v1255 = vmul.f32 %v1254, %v1174
      %v1257 = vsel %vm366, %v1255, 0
      %1259 = vmatprep.subr.mxu0 0.0
      %1260 = vmatpush1.msra.mxu0 0.0
      %1261 = vmatprep.subr.mxu0 0.0
      %1262 = vmatpush1.msra.mxu0 0.0
      %1263 = vmatprep.subr.mxu0 0.0
      %1264 = vmatpush1.msra.mxu0 0.0
      %1265 = vmatprep.subr.mxu0 0.0
      %1266 = vmatpush1.msra.mxu0 0.0
      %1267 = vmatprep.subr.mxu0 0.0
      %1268 = vmatpush1.msra.mxu0 0.0
      %1269 = vmatprep.subr.mxu0 0.0
      %1270 = vmatpush1.msra.mxu0 0.0
      %1271 = vmatprep.subr.mxu0 0.0
      %1272 = vmatpush1.msra.mxu0 0.0
      %1273 = vmatprep.subr.mxu0 0.0
      %1274 = vmatpush1.msra.mxu0 0.0
      %1275 = vmatprep.subr.mxu0 0.0
      %1276 = vmatpush1.msra.mxu0 0.0
      %1277 = vmatprep.subr.mxu0 0.0
      %1278 = vmatpush1.msra.mxu0 0.0
      %1279 = vmatprep.subr.mxu0 0.0
      %1280 = vmatpush1.msra.mxu0 0.0
      %1281 = vmatprep.subr.mxu0 0.0
      %1282 = vmatpush1.msra.mxu0 0.0
      %1283 = vmatprep.subr.mxu0 0.0
      %1284 = vmatpush1.msra.mxu0 %v861
      %1285 = vmatprep.subr.mxu0 0.0
      %1286 = vmatpush1.msra.mxu0 %v860
      %1287 = vmatprep.subr.mxu0 0.0
      %1288 = vmatpush1.msra.mxu0 %v859
      %1289 = vmatprep.subr.mxu0 0.0
      %1290 = vmatpush1.msra.mxu0 %v858
      %1291 = vmatprep.subr.mxu0 0.0
      %1292 = vmatpush2.msra.mxu0 0.0
      %1293 = vmatprep.subr.mxu0 0.0
      %1294 = vmatpush2.msra.mxu0 0.0
      %1295 = vmatprep.subr.mxu0 0.0
      %1296 = vmatpush2.msra.mxu0 0.0
      %1297 = vmatprep.subr.mxu0 0.0
      %1298 = vmatpush2.msra.mxu0 0.0
      %1299 = vmatprep.subr.mxu0 0.0
      %1300 = vmatpush2.msra.mxu0 0.0
      %1301 = vmatprep.subr.mxu0 0.0
      %1302 = vmatpush2.msra.mxu0 0.0
      %1303 = vmatprep.subr.mxu0 0.0
      %1304 = vmatpush2.msra.mxu0 0.0
      %1305 = vmatprep.subr.mxu0 0.0
      %1306 = vmatpush2.msra.mxu0 0.0
      %1307 = vmatprep.subr.mxu0 0.0
      %1308 = vmatpush2.msra.mxu0 0.0
      %1309 = vmatprep.subr.mxu0 0.0
      %1310 = vmatpush2.msra.mxu0 0.0
      %1311 = vmatprep.subr.mxu0 0.0
      %1312 = vmatpush2.msra.mxu0 0.0
      %1313 = vmatprep.subr.mxu0 0.0
      %1314 = vmatpush2.msra.mxu0 0.0
      %1315 = vmatprep.subr.mxu0 0.0
      %1316 = vmatpush2.msra.mxu0 0.0
      %1317 = vmatprep.subr.mxu0 0.0
      %1318 = vmatpush2.msra.mxu0 0.0
      %1319 = vmatprep.subr.mxu0 0.0
      %1320 = vmatpush2.msra.mxu0 0.0
      %1321 = vmatprep.subr.mxu0 0.0
      %1322 = vmatpush2.msra.mxu0 0.0
      %1323 = vmatprep.mubr.f32.mxu0 0.0
      %1324 = vmatmul.mubr.f32.gmra.mxu0 %v1257
      %v1325 = vpop.f32.mrf.mxu0
      %v1326 = vadd.f32 0.0, %v1325
      %v1327 = vpop.f32.mrf.mxu0
      %1328 = vdwg.mxu0
      %v1329 = vadd.f32 %v826, %v1326
      %v1330 = vtanh.pop %v1329
      %v1332 = vsel %vm366, %v1330, 0
      %1334 = vmatprep.subr.mxu0 0.0
      %1335 = vmatpush1.msra.mxu0 0.0
      %1336 = vmatprep.subr.mxu0 0.0
      %1337 = vmatpush1.msra.mxu0 0.0
      %1338 = vmatprep.subr.mxu0 0.0
      %1339 = vmatpush1.msra.mxu0 0.0
      %1340 = vmatprep.subr.mxu0 0.0
      %1341 = vmatpush1.msra.mxu0 0.0
      %1342 = vmatprep.subr.mxu0 0.0
      %1343 = vmatpush1.msra.mxu0 0.0
      %1344 = vmatprep.subr.mxu0 0.0
      %1345 = vmatpush1.msra.mxu0 0.0
      %1346 = vmatprep.subr.mxu0 0.0
      %1347 = vmatpush1.msra.mxu0 0.0
      %1348 = vmatprep.subr.mxu0 0.0
      %1349 = vmatpush1.msra.mxu0 0.0
      %1350 = vmatprep.subr.mxu0 0.0
      %1351 = vmatpush1.msra.mxu0 0.0
      %1352 = vmatprep.subr.mxu0 0.0
      %1353 = vmatpush1.msra.mxu0 0.0
      %1354 = vmatprep.subr.mxu0 0.0
      %1355 = vmatpush1.msra.mxu0 0.0
      %1356 = vmatprep.subr.mxu0 0.0
      %1357 = vmatpush1.msra.mxu0 0.0
      %1358 = vmatprep.subr.mxu0 0.0
      %1359 = vmatpush1.msra.mxu0 %v857
      %1360 = vmatprep.subr.mxu0 0.0
      %1361 = vmatpush1.msra.mxu0 %v856
      %1362 = vmatprep.subr.mxu0 0.0
      %1363 = vmatpush1.msra.mxu0 %v855
      %1364 = vmatprep.subr.mxu0 0.0
      %1365 = vmatpush1.msra.mxu0 %v854
      %1366 = vmatprep.subr.mxu0 0.0
      %1367 = vmatpush2.msra.mxu0 0.0
      %1368 = vmatprep.subr.mxu0 0.0
      %1369 = vmatpush2.msra.mxu0 0.0
      %1370 = vmatprep.subr.mxu0 0.0
      %1371 = vmatpush2.msra.mxu0 0.0
      %1372 = vmatprep.subr.mxu0 0.0
      %1373 = vmatpush2.msra.mxu0 0.0
      %1374 = vmatprep.subr.mxu0 0.0
      %1375 = vmatpush2.msra.mxu0 0.0
      %1376 = vmatprep.subr.mxu0 0.0
      %1377 = vmatpush2.msra.mxu0 0.0
      %1378 = vmatprep.subr.mxu0 0.0
      %1379 = vmatpush2.msra.mxu0 0.0
      %1380 = vmatprep.subr.mxu0 0.0
      %1381 = vmatpush2.msra.mxu0 0.0
      %1382 = vmatprep.subr.mxu0 0.0
      %1383 = vmatpush2.msra.mxu0 0.0
      %1384 = vmatprep.subr.mxu0 0.0
      %1385 = vmatpush2.msra.mxu0 0.0
      %1386 = vmatprep.subr.mxu0 0.0
      %1387 = vmatpush2.msra.mxu0 0.0
      %1388 = vmatprep.subr.mxu0 0.0
      %1389 = vmatpush2.msra.mxu0 0.0
      %1390 = vmatprep.subr.mxu0 0.0
      %1391 = vmatpush2.msra.mxu0 0.0
      %1392 = vmatprep.subr.mxu0 0.0
      %1393 = vmatpush2.msra.mxu0 0.0
      %1394 = vmatprep.subr.mxu0 0.0
      %1395 = vmatpush2.msra.mxu0 0.0
      %1396 = vmatprep.subr.mxu0 0.0
      %1397 = vmatpush2.msra.mxu0 0.0
      %1398 = vmatprep.mubr.f32.mxu0 0.0
      %1399 = vmatmul.mubr.f32.gmra.mxu0 %v1332
      %v1400 = vpop.f32.mrf.mxu0
      %v1401 = vadd.f32 0.0, %v1400
      %v1402 = vpop.f32.mrf.mxu0
      %1403 = vdwg.mxu0
      %v1404 = vadd.f32 %v719, %v1401
      %v1405 = vxor.u32 %v1404, 2147483648
      %v1406 = vmul.f32 %v1405, 1.442695
      %v1407 = vpow.pop %v1406
      %v1408 = vadd.f32 %v1407, 1.0
      %v1409 = vrcp.pop %v1408
      %v1410 = vmul.f32 1.0, %v1409
      %v1411 = vmul.f32 %v1410, %v1330
      %v1413 = vsel %vm366, %v1411, 0
      %1415 = vmatprep.subr.mxu0 0.0
      %1416 = vmatpush1.msra.mxu0 0.0
      %1417 = vmatprep.subr.mxu0 0.0
      %1418 = vmatpush1.msra.mxu0 0.0
      %1419 = vmatprep.subr.mxu0 0.0
      %1420 = vmatpush1.msra.mxu0 0.0
      %1421 = vmatprep.subr.mxu0 0.0
      %1422 = vmatpush1.msra.mxu0 0.0
      %1423 = vmatprep.subr.mxu0 0.0
      %1424 = vmatpush1.msra.mxu0 0.0
      %1425 = vmatprep.subr.mxu0 0.0
      %1426 = vmatpush1.msra.mxu0 0.0
      %1427 = vmatprep.subr.mxu0 0.0
      %1428 = vmatpush1.msra.mxu0 0.0
      %1429 = vmatprep.subr.mxu0 0.0
      %1430 = vmatpush1.msra.mxu0 0.0
      %1431 = vmatprep.subr.mxu0 0.0
      %1432 = vmatpush1.msra.mxu0 0.0
      %1433 = vmatprep.subr.mxu0 0.0
      %1434 = vmatpush1.msra.mxu0 0.0
      %1435 = vmatprep.subr.mxu0 0.0
      %1436 = vmatpush1.msra.mxu0 0.0
      %1437 = vmatprep.subr.mxu0 0.0
      %1438 = vmatpush1.msra.mxu0 0.0
      %1439 = vmatprep.subr.mxu0 0.0
      %1440 = vmatpush1.msra.mxu0 %v861
      %1441 = vmatprep.subr.mxu0 0.0
      %1442 = vmatpush1.msra.mxu0 %v860
      %1443 = vmatprep.subr.mxu0 0.0
      %1444 = vmatpush1.msra.mxu0 %v859
      %1445 = vmatprep.subr.mxu0 0.0
      %1446 = vmatpush1.msra.mxu0 %v858
      %1447 = vmatprep.subr.mxu0 0.0
      %1448 = vmatpush2.msra.mxu0 0.0
      %1449 = vmatprep.subr.mxu0 0.0
      %1450 = vmatpush2.msra.mxu0 0.0
      %1451 = vmatprep.subr.mxu0 0.0
      %1452 = vmatpush2.msra.mxu0 0.0
      %1453 = vmatprep.subr.mxu0 0.0
      %1454 = vmatpush2.msra.mxu0 0.0
      %1455 = vmatprep.subr.mxu0 0.0
      %1456 = vmatpush2.msra.mxu0 0.0
      %1457 = vmatprep.subr.mxu0 0.0
      %1458 = vmatpush2.msra.mxu0 0.0
      %1459 = vmatprep.subr.mxu0 0.0
      %1460 = vmatpush2.msra.mxu0 0.0
      %1461 = vmatprep.subr.mxu0 0.0
      %1462 = vmatpush2.msra.mxu0 0.0
      %1463 = vmatprep.subr.mxu0 0.0
      %1464 = vmatpush2.msra.mxu0 0.0
      %1465 = vmatprep.subr.mxu0 0.0
      %1466 = vmatpush2.msra.mxu0 0.0
      %1467 = vmatprep.subr.mxu0 0.0
      %1468 = vmatpush2.msra.mxu0 0.0
      %1469 = vmatprep.subr.mxu0 0.0
      %1470 = vmatpush2.msra.mxu0 0.0
      %1471 = vmatprep.subr.mxu0 0.0
      %1472 = vmatpush2.msra.mxu0 0.0
      %1473 = vmatprep.subr.mxu0 0.0
      %1474 = vmatpush2.msra.mxu0 0.0
      %1475 = vmatprep.subr.mxu0 0.0
      %1476 = vmatpush2.msra.mxu0 0.0
      %1477 = vmatprep.subr.mxu0 0.0
      %1478 = vmatpush2.msra.mxu0 0.0
      %1479 = vmatprep.mubr.f32.mxu0 0.0
      %1480 = vmatmul.mubr.f32.gmra.mxu0 %v1413
      %v1481 = vpop.f32.mrf.mxu0
      %v1482 = vadd.f32 0.0, %v1481
      %v1483 = vpop.f32.mrf.mxu0
      %1484 = vdwg.mxu0
      %v1485 = vadd.f32 %v831, %v1482
      %v1486 = vtanh.pop %v1485
      %v1488 = vsel %vm366, %v1486, 0
      %1490 = vmatprep.subr.mxu0 0.0
      %1491 = vmatpush1.msra.mxu0 0.0
      %1492 = vmatprep.subr.mxu0 0.0
      %1493 = vmatpush1.msra.mxu0 0.0
      %1494 = vmatprep.subr.mxu0 0.0
      %1495 = vmatpush1.msra.mxu0 0.0
      %1496 = vmatprep.subr.mxu0 0.0
      %1497 = vmatpush1.msra.mxu0 0.0
      %1498 = vmatprep.subr.mxu0 0.0
      %1499 = vmatpush1.msra.mxu0 0.0
      %1500 = vmatprep.subr.mxu0 0.0
      %1501 = vmatpush1.msra.mxu0 0.0
      %1502 = vmatprep.subr.mxu0 0.0
      %1503 = vmatpush1.msra.mxu0 0.0
      %1504 = vmatprep.subr.mxu0 0.0
      %1505 = vmatpush1.msra.mxu0 0.0
      %1506 = vmatprep.subr.mxu0 0.0
      %1507 = vmatpush1.msra.mxu0 0.0
      %1508 = vmatprep.subr.mxu0 0.0
      %1509 = vmatpush1.msra.mxu0 0.0
      %1510 = vmatprep.subr.mxu0 0.0
      %1511 = vmatpush1.msra.mxu0 0.0
      %1512 = vmatprep.subr.mxu0 0.0
      %1513 = vmatpush1.msra.mxu0 0.0
      %1514 = vmatprep.subr.mxu0 0.0
      %1515 = vmatpush1.msra.mxu0 %v857
      %1516 = vmatprep.subr.mxu0 0.0
      %1517 = vmatpush1.msra.mxu0 %v856
      %1518 = vmatprep.subr.mxu0 0.0
      %1519 = vmatpush1.msra.mxu0 %v855
      %1520 = vmatprep.subr.mxu0 0.0
      %1521 = vmatpush1.msra.mxu0 %v854
      %1522 = vmatprep.subr.mxu0 0.0
      %1523 = vmatpush2.msra.mxu0 0.0
      %1524 = vmatprep.subr.mxu0 0.0
      %1525 = vmatpush2.msra.mxu0 0.0
      %1526 = vmatprep.subr.mxu0 0.0
      %1527 = vmatpush2.msra.mxu0 0.0
      %1528 = vmatprep.subr.mxu0 0.0
      %1529 = vmatpush2.msra.mxu0 0.0
      %1530 = vmatprep.subr.mxu0 0.0
      %1531 = vmatpush2.msra.mxu0 0.0
      %1532 = vmatprep.subr.mxu0 0.0
      %1533 = vmatpush2.msra.mxu0 0.0
      %1534 = vmatprep.subr.mxu0 0.0
      %1535 = vmatpush2.msra.mxu0 0.0
      %1536 = vmatprep.subr.mxu0 0.0
      %1537 = vmatpush2.msra.mxu0 0.0
      %1538 = vmatprep.subr.mxu0 0.0
      %1539 = vmatpush2.msra.mxu0 0.0
      %1540 = vmatprep.subr.mxu0 0.0
      %1541 = vmatpush2.msra.mxu0 0.0
      %1542 = vmatprep.subr.mxu0 0.0
      %1543 = vmatpush2.msra.mxu0 0.0
      %1544 = vmatprep.subr.mxu0 0.0
      %1545 = vmatpush2.msra.mxu0 0.0
      %1546 = vmatprep.subr.mxu0 0.0
      %1547 = vmatpush2.msra.mxu0 0.0
      %1548 = vmatprep.subr.mxu0 0.0
      %1549 = vmatpush2.msra.mxu0 0.0
      %1550 = vmatprep.subr.mxu0 0.0
      %1551 = vmatpush2.msra.mxu0 0.0
      %1552 = vmatprep.subr.mxu0 0.0
      %1553 = vmatpush2.msra.mxu0 0.0
      %1554 = vmatprep.mubr.f32.mxu0 0.0
      %1555 = vmatmul.mubr.f32.gmra.mxu0 %v1488
      %v1556 = vpop.f32.mrf.mxu0
      %v1557 = vadd.f32 0.0, %v1556
      %v1558 = vpop.f32.mrf.mxu0
      %1559 = vdwg.mxu0
      %v1560 = vadd.f32 %v724, %v1557
      %v1561 = vxor.u32 %v1560, 2147483648
      %v1562 = vmul.f32 %v1561, 1.442695
      %v1563 = vpow.pop %v1562
      %v1564 = vadd.f32 %v1563, 1.0
      %v1565 = vrcp.pop %v1564
      %v1566 = vmul.f32 1.0, %v1565
      %v1567 = vmul.f32 %v1566, %v1486
      %v1569 = vsel %vm366, %v1567, 0
      %1571 = vmatprep.subr.mxu0 0.0
      %1572 = vmatpush1.msra.mxu0 0.0
      %1573 = vmatprep.subr.mxu0 0.0
      %1574 = vmatpush1.msra.mxu0 0.0
      %1575 = vmatprep.subr.mxu0 0.0
      %1576 = vmatpush1.msra.mxu0 0.0
      %1577 = vmatprep.subr.mxu0 0.0
      %1578 = vmatpush1.msra.mxu0 0.0
      %1579 = vmatprep.subr.mxu0 0.0
      %1580 = vmatpush1.msra.mxu0 0.0
      %1581 = vmatprep.subr.mxu0 0.0
      %1582 = vmatpush1.msra.mxu0 0.0
      %1583 = vmatprep.subr.mxu0 0.0
      %1584 = vmatpush1.msra.mxu0 0.0
      %1585 = vmatprep.subr.mxu0 0.0
      %1586 = vmatpush1.msra.mxu0 0.0
      %1587 = vmatprep.subr.mxu0 0.0
      %1588 = vmatpush1.msra.mxu0 0.0
      %1589 = vmatprep.subr.mxu0 0.0
      %1590 = vmatpush1.msra.mxu0 0.0
      %1591 = vmatprep.subr.mxu0 0.0
      %1592 = vmatpush1.msra.mxu0 0.0
      %1593 = vmatprep.subr.mxu0 0.0
      %1594 = vmatpush1.msra.mxu0 0.0
      %1595 = vmatprep.subr.mxu0 0.0
      %1596 = vmatpush1.msra.mxu0 %v861
      %1597 = vmatprep.subr.mxu0 0.0
      %1598 = vmatpush1.msra.mxu0 %v860
      %1599 = vmatprep.subr.mxu0 0.0
      %1600 = vmatpush1.msra.mxu0 %v859
      %1601 = vmatprep.subr.mxu0 0.0
      %1602 = vmatpush1.msra.mxu0 %v858
      %1603 = vmatprep.subr.mxu0 0.0
      %1604 = vmatpush2.msra.mxu0 0.0
      %1605 = vmatprep.subr.mxu0 0.0
      %1606 = vmatpush2.msra.mxu0 0.0
      %1607 = vmatprep.subr.mxu0 0.0
      %1608 = vmatpush2.msra.mxu0 0.0
      %1609 = vmatprep.subr.mxu0 0.0
      %1610 = vmatpush2.msra.mxu0 0.0
      %1611 = vmatprep.subr.mxu0 0.0
      %1612 = vmatpush2.msra.mxu0 0.0
      %1613 = vmatprep.subr.mxu0 0.0
      %1614 = vmatpush2.msra.mxu0 0.0
      %1615 = vmatprep.subr.mxu0 0.0
      %1616 = vmatpush2.msra.mxu0 0.0
      %1617 = vmatprep.subr.mxu0 0.0
      %1618 = vmatpush2.msra.mxu0 0.0
      %1619 = vmatprep.subr.mxu0 0.0
      %1620 = vmatpush2.msra.mxu0 0.0
      %1621 = vmatprep.subr.mxu0 0.0
      %1622 = vmatpush2.msra.mxu0 0.0
      %1623 = vmatprep.subr.mxu0 0.0
      %1624 = vmatpush2.msra.mxu0 0.0
      %1625 = vmatprep.subr.mxu0 0.0
      %1626 = vmatpush2.msra.mxu0 0.0
      %1627 = vmatprep.subr.mxu0 0.0
      %1628 = vmatpush2.msra.mxu0 0.0
      %1629 = vmatprep.subr.mxu0 0.0
      %1630 = vmatpush2.msra.mxu0 0.0
      %1631 = vmatprep.subr.mxu0 0.0
      %1632 = vmatpush2.msra.mxu0 0.0
      %1633 = vmatprep.subr.mxu0 0.0
      %1634 = vmatpush2.msra.mxu0 0.0
      %1635 = vmatprep.mubr.f32.mxu0 0.0
      %1636 = vmatmul.mubr.f32.gmra.mxu0 %v1569
      %v1637 = vpop.f32.mrf.mxu0
      %v1638 = vadd.f32 0.0, %v1637
      %v1639 = vpop.f32.mrf.mxu0
      %1640 = vdwg.mxu0
      %v1641 = vadd.f32 %v836, %v1638
      %v1642 = vtanh.pop %v1641
      %v1644 = vsel %vm366, %v1642, 0
      %1646 = vmatprep.subr.mxu0 0.0
      %1647 = vmatpush1.msra.mxu0 0.0
      %1648 = vmatprep.subr.mxu0 0.0
      %1649 = vmatpush1.msra.mxu0 0.0
      %1650 = vmatprep.subr.mxu0 0.0
      %1651 = vmatpush1.msra.mxu0 0.0
      %1652 = vmatprep.subr.mxu0 0.0
      %1653 = vmatpush1.msra.mxu0 0.0
      %1654 = vmatprep.subr.mxu0 0.0
      %1655 = vmatpush1.msra.mxu0 0.0
      %1656 = vmatprep.subr.mxu0 0.0
      %1657 = vmatpush1.msra.mxu0 0.0
      %1658 = vmatprep.subr.mxu0 0.0
      %1659 = vmatpush1.msra.mxu0 0.0
      %1660 = vmatprep.subr.mxu0 0.0
      %1661 = vmatpush1.msra.mxu0 0.0
      %1662 = vmatprep.subr.mxu0 0.0
      %1663 = vmatpush1.msra.mxu0 0.0
      %1664 = vmatprep.subr.mxu0 0.0
      %1665 = vmatpush1.msra.mxu0 0.0
      %1666 = vmatprep.subr.mxu0 0.0
      %1667 = vmatpush1.msra.mxu0 0.0
      %1668 = vmatprep.subr.mxu0 0.0
      %1669 = vmatpush1.msra.mxu0 0.0
      %1670 = vmatprep.subr.mxu0 0.0
      %1671 = vmatpush1.msra.mxu0 %v857
      %1672 = vmatprep.subr.mxu0 0.0
      %1673 = vmatpush1.msra.mxu0 %v856
      %1674 = vmatprep.subr.mxu0 0.0
      %1675 = vmatpush1.msra.mxu0 %v855
      %1676 = vmatprep.subr.mxu0 0.0
      %1677 = vmatpush1.msra.mxu0 %v854
      %1678 = vmatprep.subr.mxu0 0.0
      %1679 = vmatpush2.msra.mxu0 0.0
      %1680 = vmatprep.subr.mxu0 0.0
      %1681 = vmatpush2.msra.mxu0 0.0
      %1682 = vmatprep.subr.mxu0 0.0
      %1683 = vmatpush2.msra.mxu0 0.0
      %1684 = vmatprep.subr.mxu0 0.0
      %1685 = vmatpush2.msra.mxu0 0.0
      %1686 = vmatprep.subr.mxu0 0.0
      %1687 = vmatpush2.msra.mxu0 0.0
      %1688 = vmatprep.subr.mxu0 0.0
      %1689 = vmatpush2.msra.mxu0 0.0
      %1690 = vmatprep.subr.mxu0 0.0
      %1691 = vmatpush2.msra.mxu0 0.0
      %1692 = vmatprep.subr.mxu0 0.0
      %1693 = vmatpush2.msra.mxu0 0.0
      %1694 = vmatprep.subr.mxu0 0.0
      %1695 = vmatpush2.msra.mxu0 0.0
      %1696 = vmatprep.subr.mxu0 0.0
      %1697 = vmatpush2.msra.mxu0 0.0
      %1698 = vmatprep.subr.mxu0 0.0
      %1699 = vmatpush2.msra.mxu0 0.0
      %1700 = vmatprep.subr.mxu0 0.0
      %1701 = vmatpush2.msra.mxu0 0.0
      %1702 = vmatprep.subr.mxu0 0.0
      %1703 = vmatpush2.msra.mxu0 0.0
      %1704 = vmatprep.subr.mxu0 0.0
      %1705 = vmatpush2.msra.mxu0 0.0
      %1706 = vmatprep.subr.mxu0 0.0
      %1707 = vmatpush2.msra.mxu0 0.0
      %1708 = vmatprep.subr.mxu0 0.0
      %1709 = vmatpush2.msra.mxu0 0.0
      %1710 = vmatprep.mubr.f32.mxu0 0.0
      %1711 = vmatmul.mubr.f32.gmra.mxu0 %v1644
      %v1712 = vpop.f32.mrf.mxu0
      %v1713 = vadd.f32 0.0, %v1712
      %v1714 = vpop.f32.mrf.mxu0
      %1715 = vdwg.mxu0
      %v1716 = vadd.f32 %v729, %v1713
      %v1717 = vxor.u32 %v1716, 2147483648
      %v1718 = vmul.f32 %v1717, 1.442695
      %v1719 = vpow.pop %v1718
      %v1720 = vadd.f32 %v1719, 1.0
      %v1721 = vrcp.pop %v1720
      %v1722 = vmul.f32 1.0, %v1721
      %v1723 = vmul.f32 %v1722, %v1642
      %v1725 = vsel %vm366, %v1723, 0
      %1727 = vmatprep.subr.mxu0 0.0
      %1728 = vmatpush1.msra.mxu0 0.0
      %1729 = vmatprep.subr.mxu0 0.0
      %1730 = vmatpush1.msra.mxu0 0.0
      %1731 = vmatprep.subr.mxu0 0.0
      %1732 = vmatpush1.msra.mxu0 0.0
      %1733 = vmatprep.subr.mxu0 0.0
      %1734 = vmatpush1.msra.mxu0 0.0
      %1735 = vmatprep.subr.mxu0 0.0
      %1736 = vmatpush1.msra.mxu0 0.0
      %1737 = vmatprep.subr.mxu0 0.0
      %1738 = vmatpush1.msra.mxu0 0.0
      %1739 = vmatprep.subr.mxu0 0.0
      %1740 = vmatpush1.msra.mxu0 0.0
      %1741 = vmatprep.subr.mxu0 0.0
      %1742 = vmatpush1.msra.mxu0 0.0
      %1743 = vmatprep.subr.mxu0 0.0
      %1744 = vmatpush1.msra.mxu0 0.0
      %1745 = vmatprep.subr.mxu0 0.0
      %1746 = vmatpush1.msra.mxu0 0.0
      %1747 = vmatprep.subr.mxu0 0.0
      %1748 = vmatpush1.msra.mxu0 0.0
      %1749 = vmatprep.subr.mxu0 0.0
      %1750 = vmatpush1.msra.mxu0 0.0
      %1751 = vmatprep.subr.mxu0 0.0
      %1752 = vmatpush1.msra.mxu0 %v861
      %1753 = vmatprep.subr.mxu0 0.0
      %1754 = vmatpush1.msra.mxu0 %v860
      %1755 = vmatprep.subr.mxu0 0.0
      %1756 = vmatpush1.msra.mxu0 %v859
      %1757 = vmatprep.subr.mxu0 0.0
      %1758 = vmatpush1.msra.mxu0 %v858
      %1759 = vmatprep.subr.mxu0 0.0
      %1760 = vmatpush2.msra.mxu0 0.0
      %1761 = vmatprep.subr.mxu0 0.0
      %1762 = vmatpush2.msra.mxu0 0.0
      %1763 = vmatprep.subr.mxu0 0.0
      %1764 = vmatpush2.msra.mxu0 0.0
      %1765 = vmatprep.subr.mxu0 0.0
      %1766 = vmatpush2.msra.mxu0 0.0
      %1767 = vmatprep.subr.mxu0 0.0
      %1768 = vmatpush2.msra.mxu0 0.0
      %1769 = vmatprep.subr.mxu0 0.0
      %1770 = vmatpush2.msra.mxu0 0.0
      %1771 = vmatprep.subr.mxu0 0.0
      %1772 = vmatpush2.msra.mxu0 0.0
      %1773 = vmatprep.subr.mxu0 0.0
      %1774 = vmatpush2.msra.mxu0 0.0
      %1775 = vmatprep.subr.mxu0 0.0
      %1776 = vmatpush2.msra.mxu0 0.0
      %1777 = vmatprep.subr.mxu0 0.0
      %1778 = vmatpush2.msra.mxu0 0.0
      %1779 = vmatprep.subr.mxu0 0.0
      %1780 = vmatpush2.msra.mxu0 0.0
      %1781 = vmatprep.subr.mxu0 0.0
      %1782 = vmatpush2.msra.mxu0 0.0
      %1783 = vmatprep.subr.mxu0 0.0
      %1784 = vmatpush2.msra.mxu0 0.0
      %1785 = vmatprep.subr.mxu0 0.0
      %1786 = vmatpush2.msra.mxu0 0.0
      %1787 = vmatprep.subr.mxu0 0.0
      %1788 = vmatpush2.msra.mxu0 0.0
      %1789 = vmatprep.subr.mxu0 0.0
      %1790 = vmatpush2.msra.mxu0 0.0
      %1791 = vmatprep.mubr.f32.mxu0 0.0
      %1792 = vmatmul.mubr.f32.gmra.mxu0 %v1725
      %v1793 = vpop.f32.mrf.mxu0
      %v1794 = vadd.f32 0.0, %v1793
      %v1795 = vpop.f32.mrf.mxu0
      %1796 = vdwg.mxu0
      %v1797 = vadd.f32 %v841, %v1794
      %v1798 = vtanh.pop %v1797
      %v1800 = vsel %vm366, %v1798, 0
      %1802 = vmatprep.subr.mxu0 0.0
      %1803 = vmatpush1.msra.mxu0 0.0
      %1804 = vmatprep.subr.mxu0 0.0
      %1805 = vmatpush1.msra.mxu0 0.0
      %1806 = vmatprep.subr.mxu0 0.0
      %1807 = vmatpush1.msra.mxu0 0.0
      %1808 = vmatprep.subr.mxu0 0.0
      %1809 = vmatpush1.msra.mxu0 0.0
      %1810 = vmatprep.subr.mxu0 0.0
      %1811 = vmatpush1.msra.mxu0 0.0
      %1812 = vmatprep.subr.mxu0 0.0
      %1813 = vmatpush1.msra.mxu0 0.0
      %1814 = vmatprep.subr.mxu0 0.0
      %1815 = vmatpush1.msra.mxu0 0.0
      %1816 = vmatprep.subr.mxu0 0.0
      %1817 = vmatpush1.msra.mxu0 0.0
      %1818 = vmatprep.subr.mxu0 0.0
      %1819 = vmatpush1.msra.mxu0 0.0
      %1820 = vmatprep.subr.mxu0 0.0
      %1821 = vmatpush1.msra.mxu0 0.0
      %1822 = vmatprep.subr.mxu0 0.0
      %1823 = vmatpush1.msra.mxu0 0.0
      %1824 = vmatprep.subr.mxu0 0.0
      %1825 = vmatpush1.msra.mxu0 0.0
      %1826 = vmatprep.subr.mxu0 0.0
      %1827 = vmatpush1.msra.mxu0 %v857
      %1828 = vmatprep.subr.mxu0 0.0
      %1829 = vmatpush1.msra.mxu0 %v856
      %1830 = vmatprep.subr.mxu0 0.0
      %1831 = vmatpush1.msra.mxu0 %v855
      %1832 = vmatprep.subr.mxu0 0.0
      %1833 = vmatpush1.msra.mxu0 %v854
      %1834 = vmatprep.subr.mxu0 0.0
      %1835 = vmatpush2.msra.mxu0 0.0
      %1836 = vmatprep.subr.mxu0 0.0
      %1837 = vmatpush2.msra.mxu0 0.0
      %1838 = vmatprep.subr.mxu0 0.0
      %1839 = vmatpush2.msra.mxu0 0.0
      %1840 = vmatprep.subr.mxu0 0.0
      %1841 = vmatpush2.msra.mxu0 0.0
      %1842 = vmatprep.subr.mxu0 0.0
      %1843 = vmatpush2.msra.mxu0 0.0
      %1844 = vmatprep.subr.mxu0 0.0
      %1845 = vmatpush2.msra.mxu0 0.0
      %1846 = vmatprep.subr.mxu0 0.0
      %1847 = vmatpush2.msra.mxu0 0.0
      %1848 = vmatprep.subr.mxu0 0.0
      %1849 = vmatpush2.msra.mxu0 0.0
      %1850 = vmatprep.subr.mxu0 0.0
      %1851 = vmatpush2.msra.mxu0 0.0
      %1852 = vmatprep.subr.mxu0 0.0
      %1853 = vmatpush2.msra.mxu0 0.0
      %1854 = vmatprep.subr.mxu0 0.0
      %1855 = vmatpush2.msra.mxu0 0.0
      %1856 = vmatprep.subr.mxu0 0.0
      %1857 = vmatpush2.msra.mxu0 0.0
      %1858 = vmatprep.subr.mxu0 0.0
      %1859 = vmatpush2.msra.mxu0 0.0
      %1860 = vmatprep.subr.mxu0 0.0
      %1861 = vmatpush2.msra.mxu0 0.0
      %1862 = vmatprep.subr.mxu0 0.0
      %1863 = vmatpush2.msra.mxu0 0.0
      %1864 = vmatprep.subr.mxu0 0.0
      %1865 = vmatpush2.msra.mxu0 0.0
      %1866 = vmatprep.mubr.f32.mxu0 0.0
      %1867 = vmatmul.mubr.f32.gmra.mxu0 %v1800
      %v1868 = vpop.f32.mrf.mxu0
      %v1869 = vadd.f32 0.0, %v1868
      %v1870 = vpop.f32.mrf.mxu0
      %1871 = vdwg.mxu0
      %v1872 = vadd.f32 %v734, %v1869
      %v1873 = vxor.u32 %v1872, 2147483648
      %v1874 = vmul.f32 %v1873, 1.442695
      %v1875 = vpow.pop %v1874
      %v1876 = vadd.f32 %v1875, 1.0
      %v1877 = vrcp.pop %v1876
      %v1878 = vmul.f32 1.0, %v1877
      %v1879 = vmul.f32 %v1878, %v1798
      %v1881 = vsel %vm366, %v1879, 0
      %1883 = vmatprep.subr.mxu0 0.0
      %1884 = vmatpush1.msra.mxu0 0.0
      %1885 = vmatprep.subr.mxu0 0.0
      %1886 = vmatpush1.msra.mxu0 0.0
      %1887 = vmatprep.subr.mxu0 0.0
      %1888 = vmatpush1.msra.mxu0 0.0
      %1889 = vmatprep.subr.mxu0 0.0
      %1890 = vmatpush1.msra.mxu0 0.0
      %1891 = vmatprep.subr.mxu0 0.0
      %1892 = vmatpush1.msra.mxu0 0.0
      %1893 = vmatprep.subr.mxu0 0.0
      %1894 = vmatpush1.msra.mxu0 0.0
      %1895 = vmatprep.subr.mxu0 0.0
      %1896 = vmatpush1.msra.mxu0 0.0
      %1897 = vmatprep.subr.mxu0 0.0
      %1898 = vmatpush1.msra.mxu0 0.0
      %1899 = vmatprep.subr.mxu0 0.0
      %1900 = vmatpush1.msra.mxu0 0.0
      %1901 = vmatprep.subr.mxu0 0.0
      %1902 = vmatpush1.msra.mxu0 0.0
      %1903 = vmatprep.subr.mxu0 0.0
      %1904 = vmatpush1.msra.mxu0 0.0
      %1905 = vmatprep.subr.mxu0 0.0
      %1906 = vmatpush1.msra.mxu0 0.0
      %1907 = vmatprep.subr.mxu0 0.0
      %1908 = vmatpush1.msra.mxu0 %v861
      %1909 = vmatprep.subr.mxu0 0.0
      %1910 = vmatpush1.msra.mxu0 %v860
      %1911 = vmatprep.subr.mxu0 0.0
      %1912 = vmatpush1.msra.mxu0 %v859
      %1913 = vmatprep.subr.mxu0 0.0
      %1914 = vmatpush1.msra.mxu0 %v858
      %1915 = vmatprep.subr.mxu0 0.0
      %1916 = vmatpush2.msra.mxu0 0.0
      %1917 = vmatprep.subr.mxu0 0.0
      %1918 = vmatpush2.msra.mxu0 0.0
      %1919 = vmatprep.subr.mxu0 0.0
      %1920 = vmatpush2.msra.mxu0 0.0
      %1921 = vmatprep.subr.mxu0 0.0
      %1922 = vmatpush2.msra.mxu0 0.0
      %1923 = vmatprep.subr.mxu0 0.0
      %1924 = vmatpush2.msra.mxu0 0.0
      %1925 = vmatprep.subr.mxu0 0.0
      %1926 = vmatpush2.msra.mxu0 0.0
      %1927 = vmatprep.subr.mxu0 0.0
      %1928 = vmatpush2.msra.mxu0 0.0
      %1929 = vmatprep.subr.mxu0 0.0
      %1930 = vmatpush2.msra.mxu0 0.0
      %1931 = vmatprep.subr.mxu0 0.0
      %1932 = vmatpush2.msra.mxu0 0.0
      %1933 = vmatprep.subr.mxu0 0.0
      %1934 = vmatpush2.msra.mxu0 0.0
      %1935 = vmatprep.subr.mxu0 0.0
      %1936 = vmatpush2.msra.mxu0 0.0
      %1937 = vmatprep.subr.mxu0 0.0
      %1938 = vmatpush2.msra.mxu0 0.0
      %1939 = vmatprep.subr.mxu0 0.0
      %1940 = vmatpush2.msra.mxu0 0.0
      %1941 = vmatprep.subr.mxu0 0.0
      %1942 = vmatpush2.msra.mxu0 0.0
      %1943 = vmatprep.subr.mxu0 0.0
      %1944 = vmatpush2.msra.mxu0 0.0
      %1945 = vmatprep.subr.mxu0 0.0
      %1946 = vmatpush2.msra.mxu0 0.0
      %1947 = vmatprep.mubr.f32.mxu0 0.0
      %1948 = vmatmul.mubr.f32.gmra.mxu0 %v1881
      %v1949 = vpop.f32.mrf.mxu0
      %v1950 = vadd.f32 0.0, %v1949
      %v1951 = vpop.f32.mrf.mxu0
      %1952 = vdwg.mxu0
      %v1953 = vadd.f32 %v846, %v1950
      %v1954 = vtanh.pop %v1953
      %v1956 = vsel %vm366, %v1954, 0
      %1958 = vmatprep.subr.mxu0 0.0
      %1959 = vmatpush1.msra.mxu0 0.0
      %1960 = vmatprep.subr.mxu0 0.0
      %1961 = vmatpush1.msra.mxu0 0.0
      %1962 = vmatprep.subr.mxu0 0.0
      %1963 = vmatpush1.msra.mxu0 0.0
      %1964 = vmatprep.subr.mxu0 0.0
      %1965 = vmatpush1.msra.mxu0 0.0
      %1966 = vmatprep.subr.mxu0 0.0
      %1967 = vmatpush1.msra.mxu0 0.0
      %1968 = vmatprep.subr.mxu0 0.0
      %1969 = vmatpush1.msra.mxu0 0.0
      %1970 = vmatprep.subr.mxu0 0.0
      %1971 = vmatpush1.msra.mxu0 0.0
      %1972 = vmatprep.subr.mxu0 0.0
      %1973 = vmatpush1.msra.mxu0 0.0
      %1974 = vmatprep.subr.mxu0 0.0
      %1975 = vmatpush1.msra.mxu0 0.0
      %1976 = vmatprep.subr.mxu0 0.0
      %1977 = vmatpush1.msra.mxu0 0.0
      %1978 = vmatprep.subr.mxu0 0.0
      %1979 = vmatpush1.msra.mxu0 0.0
      %1980 = vmatprep.subr.mxu0 0.0
      %1981 = vmatpush1.msra.mxu0 0.0
      %1982 = vmatprep.subr.mxu0 0.0
      %1983 = vmatpush1.msra.mxu0 %v857
      %1984 = vmatprep.subr.mxu0 0.0
      %1985 = vmatpush1.msra.mxu0 %v856
      %1986 = vmatprep.subr.mxu0 0.0
      %1987 = vmatpush1.msra.mxu0 %v855
      %1988 = vmatprep.subr.mxu0 0.0
      %1989 = vmatpush1.msra.mxu0 %v854
      %1990 = vmatprep.subr.mxu0 0.0
      %1991 = vmatpush2.msra.mxu0 0.0
      %1992 = vmatprep.subr.mxu0 0.0
      %1993 = vmatpush2.msra.mxu0 0.0
      %1994 = vmatprep.subr.mxu0 0.0
      %1995 = vmatpush2.msra.mxu0 0.0
      %1996 = vmatprep.subr.mxu0 0.0
      %1997 = vmatpush2.msra.mxu0 0.0
      %1998 = vmatprep.subr.mxu0 0.0
      %1999 = vmatpush2.msra.mxu0 0.0
      %2000 = vmatprep.subr.mxu0 0.0
      %2001 = vmatpush2.msra.mxu0 0.0
      %2002 = vmatprep.subr.mxu0 0.0
      %2003 = vmatpush2.msra.mxu0 0.0
      %2004 = vmatprep.subr.mxu0 0.0
      %2005 = vmatpush2.msra.mxu0 0.0
      %2006 = vmatprep.subr.mxu0 0.0
      %2007 = vmatpush2.msra.mxu0 0.0
      %2008 = vmatprep.subr.mxu0 0.0
      %2009 = vmatpush2.msra.mxu0 0.0
      %2010 = vmatprep.subr.mxu0 0.0
      %2011 = vmatpush2.msra.mxu0 0.0
      %2012 = vmatprep.subr.mxu0 0.0
      %2013 = vmatpush2.msra.mxu0 0.0
      %2014 = vmatprep.subr.mxu0 0.0
      %2015 = vmatpush2.msra.mxu0 0.0
      %2016 = vmatprep.subr.mxu0 0.0
      %2017 = vmatpush2.msra.mxu0 0.0
      %2018 = vmatprep.subr.mxu0 0.0
      %2019 = vmatpush2.msra.mxu0 0.0
      %2020 = vmatprep.subr.mxu0 0.0
      %2021 = vmatpush2.msra.mxu0 0.0
      %2022 = vmatprep.mubr.f32.mxu0 0.0
      %2023 = vmatmul.mubr.f32.gmra.mxu0 %v1956
      %v2024 = vpop.f32.mrf.mxu0
      %v2025 = vadd.f32 0.0, %v2024
      %v2026 = vpop.f32.mrf.mxu0
      %2027 = vdwg.mxu0
      %v2028 = vadd.f32 %v739, %v2025
      %v2029 = vxor.u32 %v2028, 2147483648
      %v2030 = vmul.f32 %v2029, 1.442695
      %v2031 = vpow.pop %v2030
      %v2032 = vadd.f32 %v2031, 1.0
      %v2033 = vrcp.pop %v2032
      %v2034 = vmul.f32 1.0, %v2033
      %v2035 = vmul.f32 %v2034, %v1954
      %v2037 = vsel %vm366, %v2035, 0
      %2039 = vmatprep.subr.mxu0 0.0
      %2040 = vmatpush1.msra.mxu0 0.0
      %2041 = vmatprep.subr.mxu0 0.0
      %2042 = vmatpush1.msra.mxu0 0.0
      %2043 = vmatprep.subr.mxu0 0.0
      %2044 = vmatpush1.msra.mxu0 0.0
      %2045 = vmatprep.subr.mxu0 0.0
      %2046 = vmatpush1.msra.mxu0 0.0
      %2047 = vmatprep.subr.mxu0 0.0
      %2048 = vmatpush1.msra.mxu0 0.0
      %2049 = vmatprep.subr.mxu0 0.0
      %2050 = vmatpush1.msra.mxu0 0.0
      %2051 = vmatprep.subr.mxu0 0.0
      %2052 = vmatpush1.msra.mxu0 0.0
      %2053 = vmatprep.subr.mxu0 0.0
      %2054 = vmatpush1.msra.mxu0 0.0
      %2055 = vmatprep.subr.mxu0 0.0
      %2056 = vmatpush1.msra.mxu0 0.0
      %2057 = vmatprep.subr.mxu0 0.0
      %2058 = vmatpush1.msra.mxu0 0.0
      %2059 = vmatprep.subr.mxu0 0.0
      %2060 = vmatpush1.msra.mxu0 0.0
      %2061 = vmatprep.subr.mxu0 0.0
      %2062 = vmatpush1.msra.mxu0 0.0
      %2063 = vmatprep.subr.mxu0 0.0
      %2064 = vmatpush1.msra.mxu0 %v861
      %2065 = vmatprep.subr.mxu0 0.0
      %2066 = vmatpush1.msra.mxu0 %v860
      %2067 = vmatprep.subr.mxu0 0.0
      %2068 = vmatpush1.msra.mxu0 %v859
      %2069 = vmatprep.subr.mxu0 0.0
      %2070 = vmatpush1.msra.mxu0 %v858
      %2071 = vmatprep.subr.mxu0 0.0
      %2072 = vmatpush2.msra.mxu0 0.0
      %2073 = vmatprep.subr.mxu0 0.0
      %2074 = vmatpush2.msra.mxu0 0.0
      %2075 = vmatprep.subr.mxu0 0.0
      %2076 = vmatpush2.msra.mxu0 0.0
      %2077 = vmatprep.subr.mxu0 0.0
      %2078 = vmatpush2.msra.mxu0 0.0
      %2079 = vmatprep.subr.mxu0 0.0
      %2080 = vmatpush2.msra.mxu0 0.0
      %2081 = vmatprep.subr.mxu0 0.0
      %2082 = vmatpush2.msra.mxu0 0.0
      %2083 = vmatprep.subr.mxu0 0.0
      %2084 = vmatpush2.msra.mxu0 0.0
      %2085 = vmatprep.subr.mxu0 0.0
      %2086 = vmatpush2.msra.mxu0 0.0
      %2087 = vmatprep.subr.mxu0 0.0
      %2088 = vmatpush2.msra.mxu0 0.0
      %2089 = vmatprep.subr.mxu0 0.0
      %2090 = vmatpush2.msra.mxu0 0.0
      %2091 = vmatprep.subr.mxu0 0.0
      %2092 = vmatpush2.msra.mxu0 0.0
      %2093 = vmatprep.subr.mxu0 0.0
      %2094 = vmatpush2.msra.mxu0 0.0
      %2095 = vmatprep.subr.mxu0 0.0
      %2096 = vmatpush2.msra.mxu0 0.0
      %2097 = vmatprep.subr.mxu0 0.0
      %2098 = vmatpush2.msra.mxu0 0.0
      %2099 = vmatprep.subr.mxu0 0.0
      %2100 = vmatpush2.msra.mxu0 0.0
      %2101 = vmatprep.subr.mxu0 0.0
      %2102 = vmatpush2.msra.mxu0 0.0
      %2103 = vmatprep.mubr.f32.mxu0 0.0
      %2104 = vmatmul.mubr.f32.gmra.mxu0 %v2037
      %v2105 = vpop.f32.mrf.mxu0
      %v2106 = vadd.f32 0.0, %v2105
      %v2107 = vpop.f32.mrf.mxu0
      %2108 = vdwg.mxu0
      %v2109 = vadd.f32 %v851, %v2106
      %v2110 = vtanh.pop %v2109
      %2111 = vst.msk [vmem:[%s295] sm:$0xff] %vm366, %v1018
      %2112 = vst.msk [vmem:[%s295 + $0x8] sm:$0xff] %vm366, %v1174
      %2113 = vst.msk [vmem:[%s295 + $0x10] sm:$0xff] %vm366, %v1330
      %2114 = vst.msk [vmem:[%s295 + $0x18] sm:$0xff] %vm366, %v1486
      %2115 = vst.msk [vmem:[%s295 + $0x20] sm:$0xff] %vm366, %v1642
      %2116 = vst.msk [vmem:[%s295 + $0x28] sm:$0xff] %vm366, %v1798
      %2117 = vst.msk [vmem:[%s295 + $0x30] sm:$0xff] %vm366, %v1954
      %2118 = vst.msk [vmem:[%s295 + $0x38] sm:$0xff] %vm366, %v2110
      %p2119 = scmp.lt.s32.totalorder %s18, 1
      %s2120 = scalar_select %p2119, %s18, 1
      %s2121 = smul.addr %s2120, 8
      %s2122 = smul.addr %s2121, 8
      %s2123 = scalar_lea.vmem %s7, %s2122
      // Predicated region
      $region49: #{tpu_custom_call.1} parent=47 // pred_check
        %p2124 = pneg %p193
      $region50: #{tpu_custom_call.1} parent=47 // pred_check_branch
        %2126 = sbr.rel (%p2124) target = $region52
      $region51: #{tpu_custom_call.1} parent=47 // pred_region
        _
      $region52: #{tpu_custom_call.1} parent=47 // pred_fallthru
        _
    $region48: #{tpu_custom_call.1} parent=5 // pred_fallthru
      _
    %p2127 = scmp.le.s32.totalorder 2, %s13
    // Predicated region
    $region53: #{tpu_custom_call.1} parent=5 // pred_check
      %p2128 = pneg %p2127
    $region54: #{tpu_custom_call.1} parent=5 // pred_check_branch
      %2130 = sbr.rel (%p2128) target = $region56
    $region55: #{tpu_custom_call.1} parent=5 // pred_region
      %s2131 = ssub.s32 %s13, 2
      // Predicated region
      $region57: #{tpu_custom_call.1} parent=55 // pred_check
        %p2132 = pneg %p199
      $region58: #{tpu_custom_call.1} parent=55 // pred_check_branch
        %2134 = sbr.rel (%p2132) target = $region60
      $region59: #{tpu_custom_call.1} parent=55 // pred_region
        %p2135 = scmp.lt.s32.totalorder %s19, 1
        %s2136 = scalar_select %p2135, %s19, 1
        %s2137 = smul.addr %s2136, 8
        %s2138 = smul.addr %s2137, 8
        %s2139 = scalar_lea.vmem %s7, %s2138
      $region60: #{tpu_custom_call.1} parent=55 // pred_fallthru
        _
    $region56: #{tpu_custom_call.1} parent=5 // pred_fallthru
      _
  $region6: #{tpu_custom_call.1} parent=0 // loop_footer
    %s17 = sadd.s32 1, %s13
  $region7: #{tpu_custom_call.1} parent=0 // loop_footer_branch
    %12 = sbr.rel target = $region3
  $region8: #{tpu_custom_call.1} parent=0 // loop_exit
    _

</llo_original>
